<compile_context>
chip_gen: v6e
topology: v6e:2x2x1
jax: 0.10.0
libtpu: 0.0.40
codegen_flags: <defaults>
</compile_context>

<pallas_src>
import functools

import jax
import jax.numpy as jnp
from jax import lax
from jax.experimental import pallas as pl
from jax.experimental.pallas import tpu as pltpu

HP = 128   # per-gate lane padding: one full vreg lane block
BP = 8     # batch padded to one f32 sublane tile


def bigru_classifier_kernel(seq_ref, tab_ref, head_ref, out_ref, *, T, B, VP, C):
    f32 = jnp.float32
    TBP = T * BP
    G3 = 3 * HP

    # --- slab layout (all offsets 8/128-aligned) -----------------------------
    # tab_ref  (2*VP + HP, 384): [0:VP] fwd gi tables (+biases baked),
    #                            [VP:2VP] bwd gi tables, [2VP:2VP+HP] Whh fwd.
    # head_ref (3*HP + 4*BP, 128): fc1w_fwd, fc1w_bwd, fc2w, then 4 biases
    #                              row-replicated to 8 sublanes each.
    b_hn_f = head_ref[3 * HP + 0 * BP:3 * HP + 1 * BP]              # (BP, HP)
    b_hn_b = head_ref[3 * HP + 1 * BP:3 * HP + 2 * BP]
    fc1_b  = head_ref[3 * HP + 2 * BP:3 * HP + 3 * BP]
    fc2_b  = head_ref[3 * HP + 3 * BP:3 * HP + 4 * BP]

    # --- fused embedding gather + input projection + bias --------------------
    # one-hot matmul against the pre-folded (VP, 3*128) table; exact in f32
    # (one-hot picks exactly one row, all other contributions are exact zeros).
    ids = seq_ref[...]                                               # (TBP, 1) i32
    onehot = (ids == lax.broadcasted_iota(jnp.int32, (TBP, VP), 1)).astype(f32)
    gi_all = jnp.dot(onehot, tab_ref[0:VP], preferred_element_type=f32)  # (TBP, 384)

    def sigmoid(x):
        # exact identity: sigma(x) = 0.5*(tanh(x/2) + 1); single EUP op.
        return 0.5 * (jnp.tanh(0.5 * x) + 1.0)

    # --- forward recurrence, fully unrolled ----------------------------------
    # h carried as (BP, HP) with pad lanes (>= H) staying exactly zero; the only
    # op left on the serial chain per step is ONE fused h @ Whh matmul.
    whh = tab_ref[2 * VP:2 * VP + HP]                                # (HP, 384)
    h = jnp.zeros((BP, HP), f32)
    for t in range(T):
        gi = gi_all[t * BP:(t + 1) * BP]                             # (BP, 384)
        gh = jnp.dot(h, whh, preferred_element_type=f32)             # (BP, 384)
        r = sigmoid(gi[:, 0:HP] + gh[:, 0:HP])
        z = sigmoid(gi[:, HP:2 * HP] + gh[:, HP:2 * HP])
        n = jnp.tanh(gi[:, 2 * HP:G3] + r * (gh[:, 2 * HP:G3] + b_hn_f))
        h = (1.0 - z) * n + z * h
    h_fwd = h

    # --- backward direction: one reverse step from h0 = 0 (exact) ------------
    gb = jnp.dot(onehot[(T - 1) * BP:TBP], tab_ref[VP:2 * VP],
                 preferred_element_type=f32)                         # (BP, 384)
    r_b = sigmoid(gb[:, 0:HP])
    z_b = sigmoid(gb[:, HP:2 * HP])
    n_b = jnp.tanh(gb[:, 2 * HP:G3] + r_b * b_hn_b)
    h_bwd = (1.0 - z_b) * n_b                                        # z_b * h0 == 0

    # --- classifier head (concat-free fc1 split along its input dim) ---------
    x1 = jnp.maximum(
        jnp.dot(h_fwd, head_ref[0:HP], preferred_element_type=f32)
        + jnp.dot(h_bwd, head_ref[HP:2 * HP], preferred_element_type=f32)
        + fc1_b, 0.0)                                                # (BP, HP)
    logits = (jnp.dot(x1, head_ref[2 * HP:3 * HP], preferred_element_type=f32)
              + fc2_b)                                               # (BP, HP)
    out_ref[...] = logits[:B, :C]


def prepare_kernel_params(params):
    """One-time re-layout of PyTorch-style params into two packed slabs."""
    f32 = jnp.float32
    H = params["whh_f_t"].shape[0]
    V, _E = params["emb"].shape
    VP = ((V + HP - 1) // HP) * HP
    C = params["fc2_b"].shape[-1]
    emb = params["emb"].astype(f32)

    def gi_table(wih_t, bih, bhh):
        # emb-folded per-gate projection with biases baked; gate order [r,z,n];
        # r/z get bih+bhh, n gets bih only (bhh_n is applied as r*(gh_n+bhh_n)).
        proj = emb @ wih_t.astype(f32)                                # (V, 3H)
        bias = jnp.concatenate(
            [bih[:, :2 * H] + bhh[:, :2 * H], bih[:, 2 * H:3 * H]], axis=1)
        proj = proj + bias
        out = jnp.zeros((VP, 3 * HP), f32)
        for g in range(3):
            out = out.at[:V, g * HP:g * HP + H].set(proj[:, g * H:(g + 1) * H])
        return out

    def whh_pack(whh_t):                      # (H, 3H) -> (HP, 3*HP), gate-padded
        out = jnp.zeros((HP, 3 * HP), f32)
        for g in range(3):
            out = out.at[:H, g * HP:g * HP + H].set(whh_t[:, g * H:(g + 1) * H])
        return out

    def pad2(w, rows, cols):
        return jnp.zeros((rows, cols), f32).at[:w.shape[0], :w.shape[1]].set(w)

    def bias_block(b):                        # (1, n) -> (BP, HP) row-replicated
        return jnp.tile(pad2(b, 1, HP), (BP, 1))

    tab = jnp.concatenate([
        gi_table(params["wih_f_t"], params["bih_f"], params["bhh_f"]),
        gi_table(params["wih_b_t"], params["bih_b"], params["bhh_b"]),
        whh_pack(params["whh_f_t"]),
    ], axis=0)                                # (2*VP + HP, 384)

    head = jnp.concatenate([
        pad2(params["fc1_w_t"][:H], HP, HP),          # fc1, forward half
        pad2(params["fc1_w_t"][H:], HP, HP),          # fc1, backward half
        pad2(params["fc2_w_t"], HP, HP),
        bias_block(params["bhh_f"][:, 2 * H:3 * H]),  # b_hn forward
        bias_block(params["bhh_b"][:, 2 * H:3 * H]),  # b_hn backward
        bias_block(params["fc1_b"]),
        bias_block(params["fc2_b"]),
    ], axis=0)                                # (3*HP + 4*BP, 128)

    return {"tab": tab, "head": head, "n_class": C}


@functools.partial(jax.jit, static_argnames=("n_class",))
def bigru_classifier(seq, tab, head, n_class):
    B, T = seq.shape
    VP = (tab.shape[0] - HP) // 2

    # Batch padded to one sublane tile (dummy id 0, results discarded),
    # time-major flattened: row t*BP + b -> token (b, t).
    seq_pad = jnp.zeros((BP, T), jnp.int32).at[:B].set(seq.astype(jnp.int32))
    seq_tb = jnp.transpose(seq_pad, (1, 0)).reshape(T * BP, 1)

    vmem = pl.BlockSpec(memory_space=pltpu.MemorySpace.VMEM)
    return pl.pallas_call(
        functools.partial(bigru_classifier_kernel, T=T, B=B, VP=VP, C=n_class),
        out_shape=jax.ShapeDtypeStruct((B, n_class), jnp.float32),
        in_specs=[vmem, vmem, vmem],
        out_specs=vmem,
    )(seq_tb, tab, head)


def make_params(key, vocab_size, emb_dim, hidden_dim, n_class):
    ks = jax.random.split(key, 16)
    H, E = hidden_dim, emb_dim
    u = lambda k, shape, bound: jax.random.uniform(k, shape, jnp.float32, -bound, bound)
    gru_bound = 1.0 / jnp.sqrt(H)
    fc1_bound = 1.0 / jnp.sqrt(2 * H)
    fc2_bound = 1.0 / jnp.sqrt(H)
    return {
        "emb": jax.random.normal(ks[0], (vocab_size, E), jnp.float32),
        # forward direction (stored transposed: x @ W), PyTorch gate order [r,z,n]
        "wih_f_t": u(ks[1], (E, 3 * H), gru_bound),
        "whh_f_t": u(ks[2], (H, 3 * H), gru_bound),
        "bih_f":   u(ks[3], (1, 3 * H), gru_bound),
        "bhh_f":   u(ks[4], (1, 3 * H), gru_bound),
        # reverse direction
        "wih_b_t": u(ks[5], (E, 3 * H), gru_bound),
        "whh_b_t": u(ks[6], (H, 3 * H), gru_bound),
        "bih_b":   u(ks[7], (1, 3 * H), gru_bound),
        "bhh_b":   u(ks[8], (1, 3 * H), gru_bound),
        # classifier head
        "fc1_w_t": u(ks[9], (2 * H, H), fc1_bound),
        "fc1_b":   u(ks[10], (1, H), fc1_bound),
        "fc2_w_t": u(ks[11], (H, n_class), fc2_bound),
        "fc2_b":   u(ks[12], (1, n_class), fc2_bound),
    }


def reference(seq, params):
    # Pure-JAX reference mirroring the PyTorch forward (for correctness check).
    emb = jnp.take(params["emb"], seq, axis=0)
    emb = jnp.transpose(emb, (1, 0, 2)).astype(jnp.float32)
    T, B, _E = emb.shape
    H = params["whh_f_t"].shape[0]

    def gru_step(x, h, wih_t, whh_t, bih, bhh):
        gi = x @ wih_t + bih
        gh = h @ whh_t + bhh
        r = jax.nn.sigmoid(gi[:, :H] + gh[:, :H])
        z = jax.nn.sigmoid(gi[:, H:2 * H] + gh[:, H:2 * H])
        n = jnp.tanh(gi[:, 2 * H:] + r * gh[:, 2 * H:])
        return (1.0 - z) * n + z * h

    h = jnp.zeros((B, H), jnp.float32)
    for t in range(T):
        h = gru_step(emb[t], h, params["wih_f_t"], params["whh_f_t"],
                     params["bih_f"], params["bhh_f"])
    hb = gru_step(emb[T - 1], jnp.zeros((B, H), jnp.float32),
                  params["wih_b_t"], params["whh_b_t"],
                  params["bih_b"], params["bhh_b"])
    feat = jnp.concatenate([h, hb], axis=1)
    x1 = jnp.maximum(feat @ params["fc1_w_t"] + params["fc1_b"], 0.0)
    return x1 @ params["fc2_w_t"] + params["fc2_b"]


if __name__ == "__main__":
    n_class, vocab_size, emb_dim, hidden_dim = 4, 50, 16, 32
    batch, seq_len = 2, 8

    key = jax.random.PRNGKey(0)
    k_seq, k_par = jax.random.split(key)
    seq = jax.random.randint(k_seq, (batch, seq_len), 0, vocab_size, dtype=jnp.int32)
    params = make_params(k_par, vocab_size, emb_dim, hidden_dim, n_class)
    kp = prepare_kernel_params(params)   # one-time weight folding / slab packing

    out = jax.block_until_ready(
        bigru_classifier(seq, kp["tab"], kp["head"], n_class=kp["n_class"]))
    ref = jax.block_until_ready(reference(seq, params))

    assert out.shape == (batch, n_class)
    assert jnp.allclose(out, ref, atol=1e-4, rtol=1e-4), "mismatch vs JAX reference"

    print("KERNEL_OK")
</pallas_src>

<mosaic_0001>
module attributes {stable_mosaic.version = 11 : i64} {
  func.func @bigru_classifier_kernel(%arg0: memref<64x1xi32, #tpu.memory_space<vmem>>, %arg1: memref<384x384xf32, #tpu.memory_space<vmem>>, %arg2: memref<416x128xf32, #tpu.memory_space<vmem>>, %arg3: memref<2x4xf32, #tpu.memory_space<vmem>>) attributes {dimension_semantics = [], scalar_prefetch = 0 : i64, scratch_operands = 0 : i64, tpu.core_type = #tpu.core_type<tc>} {
    %c384 = arith.constant 384 : index
    %c0 = arith.constant 0 : index
    %0 = vector.load %arg2[%c384, %c0] : memref<416x128xf32, #tpu.memory_space<vmem>>, vector<8x128xf32>
    %c392 = arith.constant 392 : index
    %c0_0 = arith.constant 0 : index
    %1 = vector.load %arg2[%c392, %c0_0] : memref<416x128xf32, #tpu.memory_space<vmem>>, vector<8x128xf32>
    %c400 = arith.constant 400 : index
    %c0_1 = arith.constant 0 : index
    %2 = vector.load %arg2[%c400, %c0_1] : memref<416x128xf32, #tpu.memory_space<vmem>>, vector<8x128xf32>
    %c408 = arith.constant 408 : index
    %c0_2 = arith.constant 0 : index
    %3 = vector.load %arg2[%c408, %c0_2] : memref<416x128xf32, #tpu.memory_space<vmem>>, vector<8x128xf32>
    %c0_3 = arith.constant 0 : index
    %c0_4 = arith.constant 0 : index
    %4 = vector.load %arg0[%c0_3, %c0_4] : memref<64x1xi32, #tpu.memory_space<vmem>>, vector<64x1xi32>
    %5 = tpu.iota {dimensions = array<i32: 1>} : vector<64x128xi32>
    %6 = vector.broadcast %4 : vector<64x1xi32> to vector<64x128xi32>
    %7 = arith.cmpi eq, %6, %5 : vector<64x128xi32>
    %8 = arith.extui %7 : vector<64x128xi1> to vector<64x128xi32>
    %9 = arith.sitofp %8 : vector<64x128xi32> to vector<64x128xf32>
    %c0_5 = arith.constant 0 : index
    %c0_6 = arith.constant 0 : index
    %10 = vector.load %arg1[%c0_5, %c0_6] : memref<384x384xf32, #tpu.memory_space<vmem>>, vector<128x384xf32>
    %cst = arith.constant dense<0.000000e+00> : vector<64x384xf32>
    %11 = tpu.matmul %9, %10, %cst {dimension_numbers = #tpu.dot_dimension_numbers<[1], [0], [0], [1], [0, 0, 1, 1], [], []>} : vector<64x128xf32>, vector<128x384xf32>, vector<64x384xf32> -> vector<64x384xf32>
    %c256 = arith.constant 256 : index
    %c0_7 = arith.constant 0 : index
    %12 = vector.load %arg1[%c256, %c0_7] : memref<384x384xf32, #tpu.memory_space<vmem>>, vector<128x384xf32>
    %cst_8 = arith.constant 0.000000e+00 : f32
    %13 = vector.broadcast %cst_8 : f32 to vector<8x128xf32>
    %14 = vector.extract_strided_slice %11 {offsets = [0, 0], sizes = [8, 384], strides = [1, 1]} : vector<64x384xf32> to vector<8x384xf32>
    %cst_9 = arith.constant dense<0.000000e+00> : vector<8x384xf32>
    %15 = tpu.matmul %13, %12, %cst_9 {dimension_numbers = #tpu.dot_dimension_numbers<[1], [0], [0], [1], [0, 0, 1, 1], [], []>} : vector<8x128xf32>, vector<128x384xf32>, vector<8x384xf32> -> vector<8x384xf32>
    %16 = vector.extract_strided_slice %14 {offsets = [0, 0], sizes = [8, 128], strides = [1, 1]} : vector<8x384xf32> to vector<8x128xf32>
    %17 = vector.extract_strided_slice %15 {offsets = [0, 0], sizes = [8, 128], strides = [1, 1]} : vector<8x384xf32> to vector<8x128xf32>
    %18 = arith.addf %16, %17 : vector<8x128xf32>
    %cst_10 = arith.constant 5.000000e-01 : f32
    %19 = vector.broadcast %cst_10 : f32 to vector<8x128xf32>
    %20 = arith.mulf %19, %18 : vector<8x128xf32>
    %21 = math.tanh %20 : vector<8x128xf32>
    %cst_11 = arith.constant 1.000000e+00 : f32
    %22 = vector.broadcast %cst_11 : f32 to vector<8x128xf32>
    %23 = arith.addf %21, %22 : vector<8x128xf32>
    %cst_12 = arith.constant 5.000000e-01 : f32
    %24 = vector.broadcast %cst_12 : f32 to vector<8x128xf32>
    %25 = arith.mulf %24, %23 : vector<8x128xf32>
    %26 = vector.extract_strided_slice %14 {offsets = [0, 128], sizes = [8, 128], strides = [1, 1]} : vector<8x384xf32> to vector<8x128xf32>
    %27 = vector.extract_strided_slice %15 {offsets = [0, 128], sizes = [8, 128], strides = [1, 1]} : vector<8x384xf32> to vector<8x128xf32>
    %28 = arith.addf %26, %27 : vector<8x128xf32>
    %cst_13 = arith.constant 5.000000e-01 : f32
    %29 = vector.broadcast %cst_13 : f32 to vector<8x128xf32>
    %30 = arith.mulf %29, %28 : vector<8x128xf32>
    %31 = math.tanh %30 : vector<8x128xf32>
    %cst_14 = arith.constant 1.000000e+00 : f32
    %32 = vector.broadcast %cst_14 : f32 to vector<8x128xf32>
    %33 = arith.addf %31, %32 : vector<8x128xf32>
    %cst_15 = arith.constant 5.000000e-01 : f32
    %34 = vector.broadcast %cst_15 : f32 to vector<8x128xf32>
    %35 = arith.mulf %34, %33 : vector<8x128xf32>
    %36 = vector.extract_strided_slice %14 {offsets = [0, 256], sizes = [8, 128], strides = [1, 1]} : vector<8x384xf32> to vector<8x128xf32>
    %37 = vector.extract_strided_slice %15 {offsets = [0, 256], sizes = [8, 128], strides = [1, 1]} : vector<8x384xf32> to vector<8x128xf32>
    %38 = arith.addf %37, %0 : vector<8x128xf32>
    %39 = arith.mulf %25, %38 : vector<8x128xf32>
    %40 = arith.addf %36, %39 : vector<8x128xf32>
    %41 = math.tanh %40 : vector<8x128xf32>
    %cst_16 = arith.constant 1.000000e+00 : f32
    %42 = vector.broadcast %cst_16 : f32 to vector<8x128xf32>
    %43 = arith.subf %42, %35 : vector<8x128xf32>
    %44 = arith.mulf %43, %41 : vector<8x128xf32>
    %45 = arith.mulf %35, %13 : vector<8x128xf32>
    %46 = arith.addf %44, %45 : vector<8x128xf32>
    %47 = vector.extract_strided_slice %11 {offsets = [8, 0], sizes = [8, 384], strides = [1, 1]} : vector<64x384xf32> to vector<8x384xf32>
    %cst_17 = arith.constant dense<0.000000e+00> : vector<8x384xf32>
    %48 = tpu.matmul %46, %12, %cst_17 {dimension_numbers = #tpu.dot_dimension_numbers<[1], [0], [0], [1], [0, 0, 1, 1], [], []>} : vector<8x128xf32>, vector<128x384xf32>, vector<8x384xf32> -> vector<8x384xf32>
    %49 = vector.extract_strided_slice %47 {offsets = [0, 0], sizes = [8, 128], strides = [1, 1]} : vector<8x384xf32> to vector<8x128xf32>
    %50 = vector.extract_strided_slice %48 {offsets = [0, 0], sizes = [8, 128], strides = [1, 1]} : vector<8x384xf32> to vector<8x128xf32>
    %51 = arith.addf %49, %50 : vector<8x128xf32>
    %cst_18 = arith.constant 5.000000e-01 : f32
    %52 = vector.broadcast %cst_18 : f32 to vector<8x128xf32>
    %53 = arith.mulf %52, %51 : vector<8x128xf32>
    %54 = math.tanh %53 : vector<8x128xf32>
    %cst_19 = arith.constant 1.000000e+00 : f32
    %55 = vector.broadcast %cst_19 : f32 to vector<8x128xf32>
    %56 = arith.addf %54, %55 : vector<8x128xf32>
    %cst_20 = arith.constant 5.000000e-01 : f32
    %57 = vector.broadcast %cst_20 : f32 to vector<8x128xf32>
    %58 = arith.mulf %57, %56 : vector<8x128xf32>
    %59 = vector.extract_strided_slice %47 {offsets = [0, 128], sizes = [8, 128], strides = [1, 1]} : vector<8x384xf32> to vector<8x128xf32>
    %60 = vector.extract_strided_slice %48 {offsets = [0, 128], sizes = [8, 128], strides = [1, 1]} : vector<8x384xf32> to vector<8x128xf32>
    %61 = arith.addf %59, %60 : vector<8x128xf32>
    %cst_21 = arith.constant 5.000000e-01 : f32
    %62 = vector.broadcast %cst_21 : f32 to vector<8x128xf32>
    %63 = arith.mulf %62, %61 : vector<8x128xf32>
    %64 = math.tanh %63 : vector<8x128xf32>
    %cst_22 = arith.constant 1.000000e+00 : f32
    %65 = vector.broadcast %cst_22 : f32 to vector<8x128xf32>
    %66 = arith.addf %64, %65 : vector<8x128xf32>
    %cst_23 = arith.constant 5.000000e-01 : f32
    %67 = vector.broadcast %cst_23 : f32 to vector<8x128xf32>
    %68 = arith.mulf %67, %66 : vector<8x128xf32>
    %69 = vector.extract_strided_slice %47 {offsets = [0, 256], sizes = [8, 128], strides = [1, 1]} : vector<8x384xf32> to vector<8x128xf32>
    %70 = vector.extract_strided_slice %48 {offsets = [0, 256], sizes = [8, 128], strides = [1, 1]} : vector<8x384xf32> to vector<8x128xf32>
    %71 = arith.addf %70, %0 : vector<8x128xf32>
    %72 = arith.mulf %58, %71 : vector<8x128xf32>
    %73 = arith.addf %69, %72 : vector<8x128xf32>
    %74 = math.tanh %73 : vector<8x128xf32>
    %cst_24 = arith.constant 1.000000e+00 : f32
    %75 = vector.broadcast %cst_24 : f32 to vector<8x128xf32>
    %76 = arith.subf %75, %68 : vector<8x128xf32>
    %77 = arith.mulf %76, %74 : vector<8x128xf32>
    %78 = arith.mulf %68, %46 : vector<8x128xf32>
    %79 = arith.addf %77, %78 : vector<8x128xf32>
    %80 = vector.extract_strided_slice %11 {offsets = [16, 0], sizes = [8, 384], strides = [1, 1]} : vector<64x384xf32> to vector<8x384xf32>
    %cst_25 = arith.constant dense<0.000000e+00> : vector<8x384xf32>
    %81 = tpu.matmul %79, %12, %cst_25 {dimension_numbers = #tpu.dot_dimension_numbers<[1], [0], [0], [1], [0, 0, 1, 1], [], []>} : vector<8x128xf32>, vector<128x384xf32>, vector<8x384xf32> -> vector<8x384xf32>
    %82 = vector.extract_strided_slice %80 {offsets = [0, 0], sizes = [8, 128], strides = [1, 1]} : vector<8x384xf32> to vector<8x128xf32>
    %83 = vector.extract_strided_slice %81 {offsets = [0, 0], sizes = [8, 128], strides = [1, 1]} : vector<8x384xf32> to vector<8x128xf32>
    %84 = arith.addf %82, %83 : vector<8x128xf32>
    %cst_26 = arith.constant 5.000000e-01 : f32
    %85 = vector.broadcast %cst_26 : f32 to vector<8x128xf32>
    %86 = arith.mulf %85, %84 : vector<8x128xf32>
    %87 = math.tanh %86 : vector<8x128xf32>
    %cst_27 = arith.constant 1.000000e+00 : f32
    %88 = vector.broadcast %cst_27 : f32 to vector<8x128xf32>
    %89 = arith.addf %87, %88 : vector<8x128xf32>
    %cst_28 = arith.constant 5.000000e-01 : f32
    %90 = vector.broadcast %cst_28 : f32 to vector<8x128xf32>
    %91 = arith.mulf %90, %89 : vector<8x128xf32>
    %92 = vector.extract_strided_slice %80 {offsets = [0, 128], sizes = [8, 128], strides = [1, 1]} : vector<8x384xf32> to vector<8x128xf32>
    %93 = vector.extract_strided_slice %81 {offsets = [0, 128], sizes = [8, 128], strides = [1, 1]} : vector<8x384xf32> to vector<8x128xf32>
    %94 = arith.addf %92, %93 : vector<8x128xf32>
    %cst_29 = arith.constant 5.000000e-01 : f32
    %95 = vector.broadcast %cst_29 : f32 to vector<8x128xf32>
    %96 = arith.mulf %95, %94 : vector<8x128xf32>
    %97 = math.tanh %96 : vector<8x128xf32>
    %cst_30 = arith.constant 1.000000e+00 : f32
    %98 = vector.broadcast %cst_30 : f32 to vector<8x128xf32>
    %99 = arith.addf %97, %98 : vector<8x128xf32>
    %cst_31 = arith.constant 5.000000e-01 : f32
    %100 = vector.broadcast %cst_31 : f32 to vector<8x128xf32>
    %101 = arith.mulf %100, %99 : vector<8x128xf32>
    %102 = vector.extract_strided_slice %80 {offsets = [0, 256], sizes = [8, 128], strides = [1, 1]} : vector<8x384xf32> to vector<8x128xf32>
    %103 = vector.extract_strided_slice %81 {offsets = [0, 256], sizes = [8, 128], strides = [1, 1]} : vector<8x384xf32> to vector<8x128xf32>
    %104 = arith.addf %103, %0 : vector<8x128xf32>
    %105 = arith.mulf %91, %104 : vector<8x128xf32>
    %106 = arith.addf %102, %105 : vector<8x128xf32>
    %107 = math.tanh %106 : vector<8x128xf32>
    %cst_32 = arith.constant 1.000000e+00 : f32
    %108 = vector.broadcast %cst_32 : f32 to vector<8x128xf32>
    %109 = arith.subf %108, %101 : vector<8x128xf32>
    %110 = arith.mulf %109, %107 : vector<8x128xf32>
    %111 = arith.mulf %101, %79 : vector<8x128xf32>
    %112 = arith.addf %110, %111 : vector<8x128xf32>
    %113 = vector.extract_strided_slice %11 {offsets = [24, 0], sizes = [8, 384], strides = [1, 1]} : vector<64x384xf32> to vector<8x384xf32>
    %cst_33 = arith.constant dense<0.000000e+00> : vector<8x384xf32>
    %114 = tpu.matmul %112, %12, %cst_33 {dimension_numbers = #tpu.dot_dimension_numbers<[1], [0], [0], [1], [0, 0, 1, 1], [], []>} : vector<8x128xf32>, vector<128x384xf32>, vector<8x384xf32> -> vector<8x384xf32>
    %115 = vector.extract_strided_slice %113 {offsets = [0, 0], sizes = [8, 128], strides = [1, 1]} : vector<8x384xf32> to vector<8x128xf32>
    %116 = vector.extract_strided_slice %114 {offsets = [0, 0], sizes = [8, 128], strides = [1, 1]} : vector<8x384xf32> to vector<8x128xf32>
    %117 = arith.addf %115, %116 : vector<8x128xf32>
    %cst_34 = arith.constant 5.000000e-01 : f32
    %118 = vector.broadcast %cst_34 : f32 to vector<8x128xf32>
    %119 = arith.mulf %118, %117 : vector<8x128xf32>
    %120 = math.tanh %119 : vector<8x128xf32>
    %cst_35 = arith.constant 1.000000e+00 : f32
    %121 = vector.broadcast %cst_35 : f32 to vector<8x128xf32>
    %122 = arith.addf %120, %121 : vector<8x128xf32>
    %cst_36 = arith.constant 5.000000e-01 : f32
    %123 = vector.broadcast %cst_36 : f32 to vector<8x128xf32>
    %124 = arith.mulf %123, %122 : vector<8x128xf32>
    %125 = vector.extract_strided_slice %113 {offsets = [0, 128], sizes = [8, 128], strides = [1, 1]} : vector<8x384xf32> to vector<8x128xf32>
    %126 = vector.extract_strided_slice %114 {offsets = [0, 128], sizes = [8, 128], strides = [1, 1]} : vector<8x384xf32> to vector<8x128xf32>
    %127 = arith.addf %125, %126 : vector<8x128xf32>
    %cst_37 = arith.constant 5.000000e-01 : f32
    %128 = vector.broadcast %cst_37 : f32 to vector<8x128xf32>
    %129 = arith.mulf %128, %127 : vector<8x128xf32>
    %130 = math.tanh %129 : vector<8x128xf32>
    %cst_38 = arith.constant 1.000000e+00 : f32
    %131 = vector.broadcast %cst_38 : f32 to vector<8x128xf32>
    %132 = arith.addf %130, %131 : vector<8x128xf32>
    %cst_39 = arith.constant 5.000000e-01 : f32
    %133 = vector.broadcast %cst_39 : f32 to vector<8x128xf32>
    %134 = arith.mulf %133, %132 : vector<8x128xf32>
    %135 = vector.extract_strided_slice %113 {offsets = [0, 256], sizes = [8, 128], strides = [1, 1]} : vector<8x384xf32> to vector<8x128xf32>
    %136 = vector.extract_strided_slice %114 {offsets = [0, 256], sizes = [8, 128], strides = [1, 1]} : vector<8x384xf32> to vector<8x128xf32>
    %137 = arith.addf %136, %0 : vector<8x128xf32>
    %138 = arith.mulf %124, %137 : vector<8x128xf32>
    %139 = arith.addf %135, %138 : vector<8x128xf32>
    %140 = math.tanh %139 : vector<8x128xf32>
    %cst_40 = arith.constant 1.000000e+00 : f32
    %141 = vector.broadcast %cst_40 : f32 to vector<8x128xf32>
    %142 = arith.subf %141, %134 : vector<8x128xf32>
    %143 = arith.mulf %142, %140 : vector<8x128xf32>
    %144 = arith.mulf %134, %112 : vector<8x128xf32>
    %145 = arith.addf %143, %144 : vector<8x128xf32>
    %146 = vector.extract_strided_slice %11 {offsets = [32, 0], sizes = [8, 384], strides = [1, 1]} : vector<64x384xf32> to vector<8x384xf32>
    %cst_41 = arith.constant dense<0.000000e+00> : vector<8x384xf32>
    %147 = tpu.matmul %145, %12, %cst_41 {dimension_numbers = #tpu.dot_dimension_numbers<[1], [0], [0], [1], [0, 0, 1, 1], [], []>} : vector<8x128xf32>, vector<128x384xf32>, vector<8x384xf32> -> vector<8x384xf32>
    %148 = vector.extract_strided_slice %146 {offsets = [0, 0], sizes = [8, 128], strides = [1, 1]} : vector<8x384xf32> to vector<8x128xf32>
    %149 = vector.extract_strided_slice %147 {offsets = [0, 0], sizes = [8, 128], strides = [1, 1]} : vector<8x384xf32> to vector<8x128xf32>
    %150 = arith.addf %148, %149 : vector<8x128xf32>
    %cst_42 = arith.constant 5.000000e-01 : f32
    %151 = vector.broadcast %cst_42 : f32 to vector<8x128xf32>
    %152 = arith.mulf %151, %150 : vector<8x128xf32>
    %153 = math.tanh %152 : vector<8x128xf32>
    %cst_43 = arith.constant 1.000000e+00 : f32
    %154 = vector.broadcast %cst_43 : f32 to vector<8x128xf32>
    %155 = arith.addf %153, %154 : vector<8x128xf32>
    %cst_44 = arith.constant 5.000000e-01 : f32
    %156 = vector.broadcast %cst_44 : f32 to vector<8x128xf32>
    %157 = arith.mulf %156, %155 : vector<8x128xf32>
    %158 = vector.extract_strided_slice %146 {offsets = [0, 128], sizes = [8, 128], strides = [1, 1]} : vector<8x384xf32> to vector<8x128xf32>
    %159 = vector.extract_strided_slice %147 {offsets = [0, 128], sizes = [8, 128], strides = [1, 1]} : vector<8x384xf32> to vector<8x128xf32>
    %160 = arith.addf %158, %159 : vector<8x128xf32>
    %cst_45 = arith.constant 5.000000e-01 : f32
    %161 = vector.broadcast %cst_45 : f32 to vector<8x128xf32>
    %162 = arith.mulf %161, %160 : vector<8x128xf32>
    %163 = math.tanh %162 : vector<8x128xf32>
    %cst_46 = arith.constant 1.000000e+00 : f32
    %164 = vector.broadcast %cst_46 : f32 to vector<8x128xf32>
    %165 = arith.addf %163, %164 : vector<8x128xf32>
    %cst_47 = arith.constant 5.000000e-01 : f32
    %166 = vector.broadcast %cst_47 : f32 to vector<8x128xf32>
    %167 = arith.mulf %166, %165 : vector<8x128xf32>
    %168 = vector.extract_strided_slice %146 {offsets = [0, 256], sizes = [8, 128], strides = [1, 1]} : vector<8x384xf32> to vector<8x128xf32>
    %169 = vector.extract_strided_slice %147 {offsets = [0, 256], sizes = [8, 128], strides = [1, 1]} : vector<8x384xf32> to vector<8x128xf32>
    %170 = arith.addf %169, %0 : vector<8x128xf32>
    %171 = arith.mulf %157, %170 : vector<8x128xf32>
    %172 = arith.addf %168, %171 : vector<8x128xf32>
    %173 = math.tanh %172 : vector<8x128xf32>
    %cst_48 = arith.constant 1.000000e+00 : f32
    %174 = vector.broadcast %cst_48 : f32 to vector<8x128xf32>
    %175 = arith.subf %174, %167 : vector<8x128xf32>
    %176 = arith.mulf %175, %173 : vector<8x128xf32>
    %177 = arith.mulf %167, %145 : vector<8x128xf32>
    %178 = arith.addf %176, %177 : vector<8x128xf32>
    %179 = vector.extract_strided_slice %11 {offsets = [40, 0], sizes = [8, 384], strides = [1, 1]} : vector<64x384xf32> to vector<8x384xf32>
    %cst_49 = arith.constant dense<0.000000e+00> : vector<8x384xf32>
    %180 = tpu.matmul %178, %12, %cst_49 {dimension_numbers = #tpu.dot_dimension_numbers<[1], [0], [0], [1], [0, 0, 1, 1], [], []>} : vector<8x128xf32>, vector<128x384xf32>, vector<8x384xf32> -> vector<8x384xf32>
    %181 = vector.extract_strided_slice %179 {offsets = [0, 0], sizes = [8, 128], strides = [1, 1]} : vector<8x384xf32> to vector<8x128xf32>
    %182 = vector.extract_strided_slice %180 {offsets = [0, 0], sizes = [8, 128], strides = [1, 1]} : vector<8x384xf32> to vector<8x128xf32>
    %183 = arith.addf %181, %182 : vector<8x128xf32>
    %cst_50 = arith.constant 5.000000e-01 : f32
    %184 = vector.broadcast %cst_50 : f32 to vector<8x128xf32>
    %185 = arith.mulf %184, %183 : vector<8x128xf32>
    %186 = math.tanh %185 : vector<8x128xf32>
    %cst_51 = arith.constant 1.000000e+00 : f32
    %187 = vector.broadcast %cst_51 : f32 to vector<8x128xf32>
    %188 = arith.addf %186, %187 : vector<8x128xf32>
    %cst_52 = arith.constant 5.000000e-01 : f32
    %189 = vector.broadcast %cst_52 : f32 to vector<8x128xf32>
    %190 = arith.mulf %189, %188 : vector<8x128xf32>
    %191 = vector.extract_strided_slice %179 {offsets = [0, 128], sizes = [8, 128], strides = [1, 1]} : vector<8x384xf32> to vector<8x128xf32>
    %192 = vector.extract_strided_slice %180 {offsets = [0, 128], sizes = [8, 128], strides = [1, 1]} : vector<8x384xf32> to vector<8x128xf32>
    %193 = arith.addf %191, %192 : vector<8x128xf32>
    %cst_53 = arith.constant 5.000000e-01 : f32
    %194 = vector.broadcast %cst_53 : f32 to vector<8x128xf32>
    %195 = arith.mulf %194, %193 : vector<8x128xf32>
    %196 = math.tanh %195 : vector<8x128xf32>
    %cst_54 = arith.constant 1.000000e+00 : f32
    %197 = vector.broadcast %cst_54 : f32 to vector<8x128xf32>
    %198 = arith.addf %196, %197 : vector<8x128xf32>
    %cst_55 = arith.constant 5.000000e-01 : f32
    %199 = vector.broadcast %cst_55 : f32 to vector<8x128xf32>
    %200 = arith.mulf %199, %198 : vector<8x128xf32>
    %201 = vector.extract_strided_slice %179 {offsets = [0, 256], sizes = [8, 128], strides = [1, 1]} : vector<8x384xf32> to vector<8x128xf32>
    %202 = vector.extract_strided_slice %180 {offsets = [0, 256], sizes = [8, 128], strides = [1, 1]} : vector<8x384xf32> to vector<8x128xf32>
    %203 = arith.addf %202, %0 : vector<8x128xf32>
    %204 = arith.mulf %190, %203 : vector<8x128xf32>
    %205 = arith.addf %201, %204 : vector<8x128xf32>
    %206 = math.tanh %205 : vector<8x128xf32>
    %cst_56 = arith.constant 1.000000e+00 : f32
    %207 = vector.broadcast %cst_56 : f32 to vector<8x128xf32>
    %208 = arith.subf %207, %200 : vector<8x128xf32>
    %209 = arith.mulf %208, %206 : vector<8x128xf32>
    %210 = arith.mulf %200, %178 : vector<8x128xf32>
    %211 = arith.addf %209, %210 : vector<8x128xf32>
    %212 = vector.extract_strided_slice %11 {offsets = [48, 0], sizes = [8, 384], strides = [1, 1]} : vector<64x384xf32> to vector<8x384xf32>
    %cst_57 = arith.constant dense<0.000000e+00> : vector<8x384xf32>
    %213 = tpu.matmul %211, %12, %cst_57 {dimension_numbers = #tpu.dot_dimension_numbers<[1], [0], [0], [1], [0, 0, 1, 1], [], []>} : vector<8x128xf32>, vector<128x384xf32>, vector<8x384xf32> -> vector<8x384xf32>
    %214 = vector.extract_strided_slice %212 {offsets = [0, 0], sizes = [8, 128], strides = [1, 1]} : vector<8x384xf32> to vector<8x128xf32>
    %215 = vector.extract_strided_slice %213 {offsets = [0, 0], sizes = [8, 128], strides = [1, 1]} : vector<8x384xf32> to vector<8x128xf32>
    %216 = arith.addf %214, %215 : vector<8x128xf32>
    %cst_58 = arith.constant 5.000000e-01 : f32
    %217 = vector.broadcast %cst_58 : f32 to vector<8x128xf32>
    %218 = arith.mulf %217, %216 : vector<8x128xf32>
    %219 = math.tanh %218 : vector<8x128xf32>
    %cst_59 = arith.constant 1.000000e+00 : f32
    %220 = vector.broadcast %cst_59 : f32 to vector<8x128xf32>
    %221 = arith.addf %219, %220 : vector<8x128xf32>
    %cst_60 = arith.constant 5.000000e-01 : f32
    %222 = vector.broadcast %cst_60 : f32 to vector<8x128xf32>
    %223 = arith.mulf %222, %221 : vector<8x128xf32>
    %224 = vector.extract_strided_slice %212 {offsets = [0, 128], sizes = [8, 128], strides = [1, 1]} : vector<8x384xf32> to vector<8x128xf32>
    %225 = vector.extract_strided_slice %213 {offsets = [0, 128], sizes = [8, 128], strides = [1, 1]} : vector<8x384xf32> to vector<8x128xf32>
    %226 = arith.addf %224, %225 : vector<8x128xf32>
    %cst_61 = arith.constant 5.000000e-01 : f32
    %227 = vector.broadcast %cst_61 : f32 to vector<8x128xf32>
    %228 = arith.mulf %227, %226 : vector<8x128xf32>
    %229 = math.tanh %228 : vector<8x128xf32>
    %cst_62 = arith.constant 1.000000e+00 : f32
    %230 = vector.broadcast %cst_62 : f32 to vector<8x128xf32>
    %231 = arith.addf %229, %230 : vector<8x128xf32>
    %cst_63 = arith.constant 5.000000e-01 : f32
    %232 = vector.broadcast %cst_63 : f32 to vector<8x128xf32>
    %233 = arith.mulf %232, %231 : vector<8x128xf32>
    %234 = vector.extract_strided_slice %212 {offsets = [0, 256], sizes = [8, 128], strides = [1, 1]} : vector<8x384xf32> to vector<8x128xf32>
    %235 = vector.extract_strided_slice %213 {offsets = [0, 256], sizes = [8, 128], strides = [1, 1]} : vector<8x384xf32> to vector<8x128xf32>
    %236 = arith.addf %235, %0 : vector<8x128xf32>
    %237 = arith.mulf %223, %236 : vector<8x128xf32>
    %238 = arith.addf %234, %237 : vector<8x128xf32>
    %239 = math.tanh %238 : vector<8x128xf32>
    %cst_64 = arith.constant 1.000000e+00 : f32
    %240 = vector.broadcast %cst_64 : f32 to vector<8x128xf32>
    %241 = arith.subf %240, %233 : vector<8x128xf32>
    %242 = arith.mulf %241, %239 : vector<8x128xf32>
    %243 = arith.mulf %233, %211 : vector<8x128xf32>
    %244 = arith.addf %242, %243 : vector<8x128xf32>
    %245 = vector.extract_strided_slice %11 {offsets = [56, 0], sizes = [8, 384], strides = [1, 1]} : vector<64x384xf32> to vector<8x384xf32>
    %cst_65 = arith.constant dense<0.000000e+00> : vector<8x384xf32>
    %246 = tpu.matmul %244, %12, %cst_65 {dimension_numbers = #tpu.dot_dimension_numbers<[1], [0], [0], [1], [0, 0, 1, 1], [], []>} : vector<8x128xf32>, vector<128x384xf32>, vector<8x384xf32> -> vector<8x384xf32>
    %247 = vector.extract_strided_slice %245 {offsets = [0, 0], sizes = [8, 128], strides = [1, 1]} : vector<8x384xf32> to vector<8x128xf32>
    %248 = vector.extract_strided_slice %246 {offsets = [0, 0], sizes = [8, 128], strides = [1, 1]} : vector<8x384xf32> to vector<8x128xf32>
    %249 = arith.addf %247, %248 : vector<8x128xf32>
    %cst_66 = arith.constant 5.000000e-01 : f32
    %250 = vector.broadcast %cst_66 : f32 to vector<8x128xf32>
    %251 = arith.mulf %250, %249 : vector<8x128xf32>
    %252 = math.tanh %251 : vector<8x128xf32>
    %cst_67 = arith.constant 1.000000e+00 : f32
    %253 = vector.broadcast %cst_67 : f32 to vector<8x128xf32>
    %254 = arith.addf %252, %253 : vector<8x128xf32>
    %cst_68 = arith.constant 5.000000e-01 : f32
    %255 = vector.broadcast %cst_68 : f32 to vector<8x128xf32>
    %256 = arith.mulf %255, %254 : vector<8x128xf32>
    %257 = vector.extract_strided_slice %245 {offsets = [0, 128], sizes = [8, 128], strides = [1, 1]} : vector<8x384xf32> to vector<8x128xf32>
    %258 = vector.extract_strided_slice %246 {offsets = [0, 128], sizes = [8, 128], strides = [1, 1]} : vector<8x384xf32> to vector<8x128xf32>
    %259 = arith.addf %257, %258 : vector<8x128xf32>
    %cst_69 = arith.constant 5.000000e-01 : f32
    %260 = vector.broadcast %cst_69 : f32 to vector<8x128xf32>
    %261 = arith.mulf %260, %259 : vector<8x128xf32>
    %262 = math.tanh %261 : vector<8x128xf32>
    %cst_70 = arith.constant 1.000000e+00 : f32
    %263 = vector.broadcast %cst_70 : f32 to vector<8x128xf32>
    %264 = arith.addf %262, %263 : vector<8x128xf32>
    %cst_71 = arith.constant 5.000000e-01 : f32
    %265 = vector.broadcast %cst_71 : f32 to vector<8x128xf32>
    %266 = arith.mulf %265, %264 : vector<8x128xf32>
    %267 = vector.extract_strided_slice %245 {offsets = [0, 256], sizes = [8, 128], strides = [1, 1]} : vector<8x384xf32> to vector<8x128xf32>
    %268 = vector.extract_strided_slice %246 {offsets = [0, 256], sizes = [8, 128], strides = [1, 1]} : vector<8x384xf32> to vector<8x128xf32>
    %269 = arith.addf %268, %0 : vector<8x128xf32>
    %270 = arith.mulf %256, %269 : vector<8x128xf32>
    %271 = arith.addf %267, %270 : vector<8x128xf32>
    %272 = math.tanh %271 : vector<8x128xf32>
    %cst_72 = arith.constant 1.000000e+00 : f32
    %273 = vector.broadcast %cst_72 : f32 to vector<8x128xf32>
    %274 = arith.subf %273, %266 : vector<8x128xf32>
    %275 = arith.mulf %274, %272 : vector<8x128xf32>
    %276 = arith.mulf %266, %244 : vector<8x128xf32>
    %277 = arith.addf %275, %276 : vector<8x128xf32>
    %278 = vector.extract_strided_slice %9 {offsets = [56, 0], sizes = [8, 128], strides = [1, 1]} : vector<64x128xf32> to vector<8x128xf32>
    %c128 = arith.constant 128 : index
    %c0_73 = arith.constant 0 : index
    %279 = vector.load %arg1[%c128, %c0_73] : memref<384x384xf32, #tpu.memory_space<vmem>>, vector<128x384xf32>
    %cst_74 = arith.constant dense<0.000000e+00> : vector<8x384xf32>
    %280 = tpu.matmul %278, %279, %cst_74 {dimension_numbers = #tpu.dot_dimension_numbers<[1], [0], [0], [1], [0, 0, 1, 1], [], []>} : vector<8x128xf32>, vector<128x384xf32>, vector<8x384xf32> -> vector<8x384xf32>
    %281 = vector.extract_strided_slice %280 {offsets = [0, 0], sizes = [8, 128], strides = [1, 1]} : vector<8x384xf32> to vector<8x128xf32>
    %cst_75 = arith.constant 5.000000e-01 : f32
    %282 = vector.broadcast %cst_75 : f32 to vector<8x128xf32>
    %283 = arith.mulf %282, %281 : vector<8x128xf32>
    %284 = math.tanh %283 : vector<8x128xf32>
    %cst_76 = arith.constant 1.000000e+00 : f32
    %285 = vector.broadcast %cst_76 : f32 to vector<8x128xf32>
    %286 = arith.addf %284, %285 : vector<8x128xf32>
    %cst_77 = arith.constant 5.000000e-01 : f32
    %287 = vector.broadcast %cst_77 : f32 to vector<8x128xf32>
    %288 = arith.mulf %287, %286 : vector<8x128xf32>
    %289 = vector.extract_strided_slice %280 {offsets = [0, 128], sizes = [8, 128], strides = [1, 1]} : vector<8x384xf32> to vector<8x128xf32>
    %cst_78 = arith.constant 5.000000e-01 : f32
    %290 = vector.broadcast %cst_78 : f32 to vector<8x128xf32>
    %291 = arith.mulf %290, %289 : vector<8x128xf32>
    %292 = math.tanh %291 : vector<8x128xf32>
    %cst_79 = arith.constant 1.000000e+00 : f32
    %293 = vector.broadcast %cst_79 : f32 to vector<8x128xf32>
    %294 = arith.addf %292, %293 : vector<8x128xf32>
    %cst_80 = arith.constant 5.000000e-01 : f32
    %295 = vector.broadcast %cst_80 : f32 to vector<8x128xf32>
    %296 = arith.mulf %295, %294 : vector<8x128xf32>
    %297 = vector.extract_strided_slice %280 {offsets = [0, 256], sizes = [8, 128], strides = [1, 1]} : vector<8x384xf32> to vector<8x128xf32>
    %298 = arith.mulf %288, %1 : vector<8x128xf32>
    %299 = arith.addf %297, %298 : vector<8x128xf32>
    %300 = math.tanh %299 : vector<8x128xf32>
    %cst_81 = arith.constant 1.000000e+00 : f32
    %301 = vector.broadcast %cst_81 : f32 to vector<8x128xf32>
    %302 = arith.subf %301, %296 : vector<8x128xf32>
    %303 = arith.mulf %302, %300 : vector<8x128xf32>
    %c0_82 = arith.constant 0 : index
    %c0_83 = arith.constant 0 : index
    %304 = vector.load %arg2[%c0_82, %c0_83] : memref<416x128xf32, #tpu.memory_space<vmem>>, vector<128x128xf32>
    %cst_84 = arith.constant dense<0.000000e+00> : vector<8x128xf32>
    %305 = tpu.matmul %277, %304, %cst_84 {dimension_numbers = #tpu.dot_dimension_numbers<[1], [0], [0], [1], [0, 0, 1, 1], [], []>} : vector<8x128xf32>, vector<128x128xf32>, vector<8x128xf32> -> vector<8x128xf32>
    %c128_85 = arith.constant 128 : index
    %c0_86 = arith.constant 0 : index
    %306 = vector.load %arg2[%c128_85, %c0_86] : memref<416x128xf32, #tpu.memory_space<vmem>>, vector<128x128xf32>
    %cst_87 = arith.constant dense<0.000000e+00> : vector<8x128xf32>
    %307 = tpu.matmul %303, %306, %cst_87 {dimension_numbers = #tpu.dot_dimension_numbers<[1], [0], [0], [1], [0, 0, 1, 1], [], []>} : vector<8x128xf32>, vector<128x128xf32>, vector<8x128xf32> -> vector<8x128xf32>
    %308 = arith.addf %305, %307 : vector<8x128xf32>
    %309 = arith.addf %308, %2 : vector<8x128xf32>
    %cst_88 = arith.constant 0.000000e+00 : f32
    %310 = vector.broadcast %cst_88 : f32 to vector<8x128xf32>
    %311 = arith.maximumf %309, %310 : vector<8x128xf32>
    %c256_89 = arith.constant 256 : index
    %c0_90 = arith.constant 0 : index
    %312 = vector.load %arg2[%c256_89, %c0_90] : memref<416x128xf32, #tpu.memory_space<vmem>>, vector<128x128xf32>
    %cst_91 = arith.constant dense<0.000000e+00> : vector<8x128xf32>
    %313 = tpu.matmul %311, %312, %cst_91 {dimension_numbers = #tpu.dot_dimension_numbers<[1], [0], [0], [1], [0, 0, 1, 1], [], []>} : vector<8x128xf32>, vector<128x128xf32>, vector<8x128xf32> -> vector<8x128xf32>
    %314 = arith.addf %313, %3 : vector<8x128xf32>
    %315 = vector.extract_strided_slice %314 {offsets = [0, 0], sizes = [2, 4], strides = [1, 1]} : vector<8x128xf32> to vector<2x4xf32>
    %c0_92 = arith.constant 0 : index
    %c0_93 = arith.constant 0 : index
    %316 = vector.load %arg3[%c0_92, %c0_93] : memref<2x4xf32, #tpu.memory_space<vmem>>, vector<2x4xf32>
    tpu.vector_store %arg3[%c0_92, %c0_93], %315 {strides = array<i32>} : memref<2x4xf32, #tpu.memory_space<vmem>>, vector<2x4xf32>,
    return
  }
}

</mosaic_0001>

<llo_original>
// kernel: bigru_classifier.1
$region0: #{bigru_classifier.1}
  #allocation0 [shape = 'u32[]', space=smem, size = 0x4, offset = 0x4, fixed_abs, tag = 'smem constant byte address 0x4 - core index']
  #allocation1 [shape = 'u32[144,128]{1,0:T(1,128)}', space=vmem, size = 0x12000, scoped, tag = 'internal scratch']
  %s0 = inlined_call_operand.vmem [shape: s32[64,1], index: 0, kind: input, shape index: {}]
  %s1 = inlined_call_operand.hbm [shape: f32[384,384], index: 1, kind: input, shape index: {}]
  %s2 = inlined_call_operand.hbm [shape: f32[416,128], index: 2, kind: input, shape index: {}]
  %s3 = inlined_call_operand.hbm [shape: f32[2,4], index: 3, kind: output, shape index: {}]
  %s4 = sld [smem:[#allocation0]]
  $region30: #{bigru_classifier.1} parent=0
    _
  %s6 = ssub.s32 1, %s4
  %s7 = scalar_select 0, %s6, %s4
  $region1: #{bigru_classifier.1} parent=0
    #allocation2 [shape = 'u8[589824]{0}', space=vmem, size = 0x90000, scoped, tag = 'input window, operand 1, single buffered']
    #allocation3 [shape = 's32[1]{0}', space=sflag, size = 0x4, scoped, tag = 'scoped memory for bigru_classifier.1']
    #allocation4 [shape = 's32[1]{0}', space=sflag, size = 0x4, scoped, tag = 'scoped memory for bigru_classifier.1']
    #allocation5 [shape = 'u8[212992]{0}', space=vmem, size = 0x34000, scoped, tag = 'input window, operand 2, single buffered']
    #allocation6 [shape = 's32[1]{0}', space=sflag, size = 0x4, scoped, tag = 'scoped memory for bigru_classifier.1']
    #allocation7 [shape = 'u8[1024]{0}', space=vmem, size = 0x400, scoped, tag = 'output window, operand 0, single buffered']
    %8 = vsyncpa [#allocation3], 0
    %9 = vsyncpa [#allocation6], 0
    %10 = vsyncpa [#allocation4], 0
    // Predicated region
    $region2: #{bigru_classifier.1} parent=1 // pred_check
      _
    $region3: #{bigru_classifier.1} parent=1 // pred_check_branch
      %12 = sbr.rel (0) target = $region5
    $region4: #{bigru_classifier.1} parent=1 // pred_region
      _
    $region5: #{bigru_classifier.1} parent=1 // pred_fallthru
      _
    // Predicated region
    $region6: #{bigru_classifier.1} parent=1 // pred_check
      _
    $region7: #{bigru_classifier.1} parent=1 // pred_check_branch
      %14 = sbr.rel (0) target = $region9
    $region8: #{bigru_classifier.1} parent=1 // pred_region
      %s16 = ssub.s32 18432, 18432
      %17 = vsyncadd [#allocation3], %s16
      %s18 = sshll.u32 [#allocation2], 4
      %s19 = int_to_ptr.vmem [resolvable:$true] %s18
      %24 = dma.hbm_to_vmem [thread:$0]  %s1, 18432, %s19, [#allocation3], 384, 384, 24
    $region9: #{bigru_classifier.1} parent=1 // pred_fallthru
      _
    // Predicated region
    $region10: #{bigru_classifier.1} parent=1 // pred_check
      _
    $region11: #{bigru_classifier.1} parent=1 // pred_check_branch
      %26 = sbr.rel (0) target = $region13
    $region12: #{bigru_classifier.1} parent=1 // pred_region
      %s28 = ssub.s32 6656, 6656
      %29 = vsyncadd [#allocation6], %s28
      %s30 = sshll.u32 [#allocation5], 4
      %s31 = int_to_ptr.vmem [resolvable:$true] %s30
      %36 = dma.hbm_to_vmem [thread:$0]  %s2, 6656, %s31, [#allocation6], 128, 128, 8
    $region13: #{bigru_classifier.1} parent=1 // pred_fallthru
      _
    // Predicated region
    $region14: #{bigru_classifier.1} parent=1 // pred_check
      _
    $region15: #{bigru_classifier.1} parent=1 // pred_check_branch
      %38 = sbr.rel (0) target = $region17
    $region16: #{bigru_classifier.1} parent=1 // pred_region
      %39 = dma.done [#allocation3], 18432
    $region17: #{bigru_classifier.1} parent=1 // pred_fallthru
      _
    // Predicated region
    $region18: #{bigru_classifier.1} parent=1 // pred_check
      _
    $region19: #{bigru_classifier.1} parent=1 // pred_check_branch
      %41 = sbr.rel (0) target = $region21
    $region20: #{bigru_classifier.1} parent=1 // pred_region
      %42 = dma.done [#allocation6], 6656
    $region21: #{bigru_classifier.1} parent=1 // pred_fallthru
      _
    %v43 = vld [vmem:[#allocation5 + $0x180] sm:$0xff]
    %v44 = vld [vmem:[#allocation5 + $0x188] sm:$0xff]
    %v45 = vld [vmem:[#allocation5 + $0x190] sm:$0xff]
    %v46 = vld [vmem:[#allocation5 + $0x198] sm:$0xff]
    %v47 = vld [vmem:[%s0] sm:$0xff]
    %v48 = vld [vmem:[%s0 + $0x8] sm:$0xff]
    %v49 = vld [vmem:[%s0 + $0x10] sm:$0xff]
    %v50 = vld [vmem:[%s0 + $0x18] sm:$0xff]
    %v51 = vld [vmem:[%s0 + $0x20] sm:$0xff]
    %v52 = vld [vmem:[%s0 + $0x28] sm:$0xff]
    %v53 = vld [vmem:[%s0 + $0x30] sm:$0xff]
    %v54 = vld [vmem:[%s0 + $0x38] sm:$0xff]
    %v55 = vlaneseq
    %v56 = vand.u32 %v55, 127
    %57 = vset.pattern.permute.xlu0 0
    %58 = vperm.xlu0 %57, %v47
    %v59 = vpop.permute.xlu0 %58
    %60 = vset.pattern.permute.xlu0 0
    %61 = vperm.xlu0 %60, %v48
    %v62 = vpop.permute.xlu0 %61
    %63 = vset.pattern.permute.xlu0 0
    %64 = vperm.xlu0 %63, %v49
    %v65 = vpop.permute.xlu0 %64
    %66 = vset.pattern.permute.xlu0 0
    %67 = vperm.xlu0 %66, %v50
    %v68 = vpop.permute.xlu0 %67
    %69 = vset.pattern.permute.xlu0 0
    %70 = vperm.xlu0 %69, %v51
    %v71 = vpop.permute.xlu0 %70
    %72 = vset.pattern.permute.xlu0 0
    %73 = vperm.xlu0 %72, %v52
    %v74 = vpop.permute.xlu0 %73
    %75 = vset.pattern.permute.xlu0 0
    %76 = vperm.xlu0 %75, %v53
    %v77 = vpop.permute.xlu0 %76
    %78 = vset.pattern.permute.xlu0 0
    %79 = vperm.xlu0 %78, %v54
    %v80 = vpop.permute.xlu0 %79
    %vm81 = vcmp.eq.s32.totalorder %v59, %v56
    %vm82 = vcmp.eq.s32.totalorder %v62, %v56
    %vm83 = vcmp.eq.s32.totalorder %v65, %v56
    %vm84 = vcmp.eq.s32.totalorder %v68, %v56
    %vm85 = vcmp.eq.s32.totalorder %v71, %v56
    %vm86 = vcmp.eq.s32.totalorder %v74, %v56
    %vm87 = vcmp.eq.s32.totalorder %v77, %v56
    %vm88 = vcmp.eq.s32.totalorder %v80, %v56
    %v89 = vsel %vm81, 1, 0
    %v90 = vsel %vm82, 1, 0
    %v91 = vsel %vm83, 1, 0
    %v92 = vsel %vm84, 1, 0
    %v93 = vsel %vm85, 1, 0
    %v94 = vsel %vm86, 1, 0
    %v95 = vsel %vm87, 1, 0
    %v96 = vsel %vm88, 1, 0
    %v97 = vcvt.s32.f32 %v89
    %v98 = vcvt.s32.f32 %v90
    %v99 = vcvt.s32.f32 %v91
    %v100 = vcvt.s32.f32 %v92
    %v101 = vcvt.s32.f32 %v93
    %v102 = vcvt.s32.f32 %v94
    %v103 = vcvt.s32.f32 %v95
    %v104 = vcvt.s32.f32 %v96
    %v105 = vld [vmem:[#allocation2] sm:$0xff]
    %v106 = vld [vmem:[#allocation2 + $0x8] sm:$0xff]
    %v107 = vld [vmem:[#allocation2 + $0x10] sm:$0xff]
    %v108 = vld [vmem:[#allocation2 + $0x18] sm:$0xff]
    %v109 = vld [vmem:[#allocation2 + $0x20] sm:$0xff]
    %v110 = vld [vmem:[#allocation2 + $0x28] sm:$0xff]
    %v111 = vld [vmem:[#allocation2 + $0x30] sm:$0xff]
    %v112 = vld [vmem:[#allocation2 + $0x38] sm:$0xff]
    %v113 = vld [vmem:[#allocation2 + $0x40] sm:$0xff]
    %v114 = vld [vmem:[#allocation2 + $0x48] sm:$0xff]
    %v115 = vld [vmem:[#allocation2 + $0x50] sm:$0xff]
    %v116 = vld [vmem:[#allocation2 + $0x58] sm:$0xff]
    %v117 = vld [vmem:[#allocation2 + $0x60] sm:$0xff]
    %v118 = vld [vmem:[#allocation2 + $0x68] sm:$0xff]
    %v119 = vld [vmem:[#allocation2 + $0x70] sm:$0xff]
    %v120 = vld [vmem:[#allocation2 + $0x78] sm:$0xff]
    %v121 = vld [vmem:[#allocation2 + $0x80] sm:$0xff]
    %v122 = vld [vmem:[#allocation2 + $0x88] sm:$0xff]
    %v123 = vld [vmem:[#allocation2 + $0x90] sm:$0xff]
    %v124 = vld [vmem:[#allocation2 + $0x98] sm:$0xff]
    %v125 = vld [vmem:[#allocation2 + $0xa0] sm:$0xff]
    %v126 = vld [vmem:[#allocation2 + $0xa8] sm:$0xff]
    %v127 = vld [vmem:[#allocation2 + $0xb0] sm:$0xff]
    %v128 = vld [vmem:[#allocation2 + $0xb8] sm:$0xff]
    %v129 = vld [vmem:[#allocation2 + $0xc0] sm:$0xff]
    %v130 = vld [vmem:[#allocation2 + $0xc8] sm:$0xff]
    %v131 = vld [vmem:[#allocation2 + $0xd0] sm:$0xff]
    %v132 = vld [vmem:[#allocation2 + $0xd8] sm:$0xff]
    %v133 = vld [vmem:[#allocation2 + $0xe0] sm:$0xff]
    %v134 = vld [vmem:[#allocation2 + $0xe8] sm:$0xff]
    %v135 = vld [vmem:[#allocation2 + $0xf0] sm:$0xff]
    %v136 = vld [vmem:[#allocation2 + $0xf8] sm:$0xff]
    %v137 = vld [vmem:[#allocation2 + $0x100] sm:$0xff]
    %v138 = vld [vmem:[#allocation2 + $0x108] sm:$0xff]
    %v139 = vld [vmem:[#allocation2 + $0x110] sm:$0xff]
    %v140 = vld [vmem:[#allocation2 + $0x118] sm:$0xff]
    %v141 = vld [vmem:[#allocation2 + $0x120] sm:$0xff]
    %v142 = vld [vmem:[#allocation2 + $0x128] sm:$0xff]
    %v143 = vld [vmem:[#allocation2 + $0x130] sm:$0xff]
    %v144 = vld [vmem:[#allocation2 + $0x138] sm:$0xff]
    %v145 = vld [vmem:[#allocation2 + $0x140] sm:$0xff]
    %v146 = vld [vmem:[#allocation2 + $0x148] sm:$0xff]
    %v147 = vld [vmem:[#allocation2 + $0x150] sm:$0xff]
    %v148 = vld [vmem:[#allocation2 + $0x158] sm:$0xff]
    %v149 = vld [vmem:[#allocation2 + $0x160] sm:$0xff]
    %v150 = vld [vmem:[#allocation2 + $0x168] sm:$0xff]
    %v151 = vld [vmem:[#allocation2 + $0x170] sm:$0xff]
    %v152 = vld [vmem:[#allocation2 + $0x178] sm:$0xff]
    %153 = vmatprep.subr.mxu0 %v151
    %154 = vmatpush1.msra.mxu0 %v150
    %155 = vmatprep.subr.mxu0 %v148
    %156 = vmatpush1.msra.mxu0 %v147
    %157 = vmatprep.subr.mxu0 %v145
    %158 = vmatpush1.msra.mxu0 %v144
    %159 = vmatprep.subr.mxu0 %v142
    %160 = vmatpush1.msra.mxu0 %v141
    %161 = vmatprep.subr.mxu0 %v139
    %162 = vmatpush1.msra.mxu0 %v138
    %163 = vmatprep.subr.mxu0 %v136
    %164 = vmatpush1.msra.mxu0 %v135
    %165 = vmatprep.subr.mxu0 %v133
    %166 = vmatpush1.msra.mxu0 %v132
    %167 = vmatprep.subr.mxu0 %v130
    %168 = vmatpush1.msra.mxu0 %v129
    %169 = vmatprep.subr.mxu0 %v127
    %170 = vmatpush1.msra.mxu0 %v126
    %171 = vmatprep.subr.mxu0 %v124
    %172 = vmatpush1.msra.mxu0 %v123
    %173 = vmatprep.subr.mxu0 %v121
    %174 = vmatpush1.msra.mxu0 %v120
    %175 = vmatprep.subr.mxu0 %v118
    %176 = vmatpush1.msra.mxu0 %v117
    %177 = vmatprep.subr.mxu0 %v115
    %178 = vmatpush1.msra.mxu0 %v114
    %179 = vmatprep.subr.mxu0 %v112
    %180 = vmatpush1.msra.mxu0 %v111
    %181 = vmatprep.subr.mxu0 %v109
    %182 = vmatpush1.msra.mxu0 %v108
    %183 = vmatprep.subr.mxu0 %v106
    %184 = vmatpush1.msra.mxu0 %v105
    %185 = vmatprep.subr.mxu0 0.0
    %186 = vmatpush2.msra.mxu0 0.0
    %187 = vmatprep.subr.mxu0 0.0
    %188 = vmatpush2.msra.mxu0 0.0
    %189 = vmatprep.subr.mxu0 0.0
    %190 = vmatpush2.msra.mxu0 0.0
    %191 = vmatprep.subr.mxu0 0.0
    %192 = vmatpush2.msra.mxu0 0.0
    %193 = vmatprep.subr.mxu0 0.0
    %194 = vmatpush2.msra.mxu0 0.0
    %195 = vmatprep.subr.mxu0 0.0
    %196 = vmatpush2.msra.mxu0 0.0
    %197 = vmatprep.subr.mxu0 0.0
    %198 = vmatpush2.msra.mxu0 0.0
    %199 = vmatprep.subr.mxu0 0.0
    %200 = vmatpush2.msra.mxu0 0.0
    %201 = vmatprep.subr.mxu0 0.0
    %202 = vmatpush2.msra.mxu0 0.0
    %203 = vmatprep.subr.mxu0 0.0
    %204 = vmatpush2.msra.mxu0 0.0
    %205 = vmatprep.subr.mxu0 0.0
    %206 = vmatpush2.msra.mxu0 0.0
    %207 = vmatprep.subr.mxu0 0.0
    %208 = vmatpush2.msra.mxu0 0.0
    %209 = vmatprep.subr.mxu0 0.0
    %210 = vmatpush2.msra.mxu0 0.0
    %211 = vmatprep.subr.mxu0 0.0
    %212 = vmatpush2.msra.mxu0 0.0
    %213 = vmatprep.subr.mxu0 0.0
    %214 = vmatpush2.msra.mxu0 0.0
    %215 = vmatprep.subr.mxu0 0.0
    %216 = vmatpush2.msra.mxu0 0.0
    %217 = vmatprep.mubr.f32.mxu0 0.0
    %218 = vmatmul.mubr.f32.gmra.mxu0 %v97
    %v219 = vpop.f32.mrf.mxu0
    %v220 = vadd.f32 0.0, %v219
    %v221 = vpop.f32.mrf.mxu0
    %v222 = vadd.f32 0.0, %v221
    %223 = vmatprep.mubr.f32.mxu0 0.0
    %224 = vmatmul.mubr.f32.gmra.mxu0 %v98
    %v225 = vpop.f32.mrf.mxu0
    %v226 = vadd.f32 0.0, %v225
    %v227 = vpop.f32.mrf.mxu0
    %v228 = vadd.f32 0.0, %v227
    %229 = vmatprep.mubr.f32.mxu0 0.0
    %230 = vmatmul.mubr.f32.gmra.mxu0 %v99
    %v231 = vpop.f32.mrf.mxu0
    %v232 = vadd.f32 0.0, %v231
    %v233 = vpop.f32.mrf.mxu0
    %v234 = vadd.f32 0.0, %v233
    %235 = vmatprep.mubr.f32.mxu0 0.0
    %236 = vmatmul.mubr.f32.gmra.mxu0 %v100
    %v237 = vpop.f32.mrf.mxu0
    %v238 = vadd.f32 0.0, %v237
    %v239 = vpop.f32.mrf.mxu0
    %v240 = vadd.f32 0.0, %v239
    %241 = vmatprep.mubr.f32.mxu0 0.0
    %242 = vmatmul.mubr.f32.gmra.mxu0 %v101
    %v243 = vpop.f32.mrf.mxu0
    %v244 = vadd.f32 0.0, %v243
    %v245 = vpop.f32.mrf.mxu0
    %v246 = vadd.f32 0.0, %v245
    %247 = vmatprep.mubr.f32.mxu0 0.0
    %248 = vmatmul.mubr.f32.gmra.mxu0 %v102
    %v249 = vpop.f32.mrf.mxu0
    %v250 = vadd.f32 0.0, %v249
    %v251 = vpop.f32.mrf.mxu0
    %v252 = vadd.f32 0.0, %v251
    %253 = vmatprep.mubr.f32.mxu0 0.0
    %254 = vmatmul.mubr.f32.gmra.mxu0 %v103
    %v255 = vpop.f32.mrf.mxu0
    %v256 = vadd.f32 0.0, %v255
    %v257 = vpop.f32.mrf.mxu0
    %v258 = vadd.f32 0.0, %v257
    %259 = vmatprep.mubr.f32.mxu0 0.0
    %260 = vmatmul.mubr.f32.gmra.mxu0 %v104
    %v261 = vpop.f32.mrf.mxu0
    %v262 = vadd.f32 0.0, %v261
    %v263 = vpop.f32.mrf.mxu0
    %v264 = vadd.f32 0.0, %v263
    %265 = vdwg.mxu0
    %266 = vmatprep.subr.mxu0 0.0
    %267 = vmatpush1.msra.mxu0 %v152
    %268 = vmatprep.subr.mxu0 0.0
    %269 = vmatpush1.msra.mxu0 %v149
    %270 = vmatprep.subr.mxu0 0.0
    %271 = vmatpush1.msra.mxu0 %v146
    %272 = vmatprep.subr.mxu0 0.0
    %273 = vmatpush1.msra.mxu0 %v143
    %274 = vmatprep.subr.mxu0 0.0
    %275 = vmatpush1.msra.mxu0 %v140
    %276 = vmatprep.subr.mxu0 0.0
    %277 = vmatpush1.msra.mxu0 %v137
    %278 = vmatprep.subr.mxu0 0.0
    %279 = vmatpush1.msra.mxu0 %v134
    %280 = vmatprep.subr.mxu0 0.0
    %281 = vmatpush1.msra.mxu0 %v131
    %282 = vmatprep.subr.mxu0 0.0
    %283 = vmatpush1.msra.mxu0 %v128
    %284 = vmatprep.subr.mxu0 0.0
    %285 = vmatpush1.msra.mxu0 %v125
    %286 = vmatprep.subr.mxu0 0.0
    %287 = vmatpush1.msra.mxu0 %v122
    %288 = vmatprep.subr.mxu0 0.0
    %289 = vmatpush1.msra.mxu0 %v119
    %290 = vmatprep.subr.mxu0 0.0
    %291 = vmatpush1.msra.mxu0 %v116
    %292 = vmatprep.subr.mxu0 0.0
    %293 = vmatpush1.msra.mxu0 %v113
    %294 = vmatprep.subr.mxu0 0.0
    %295 = vmatpush1.msra.mxu0 %v110
    %296 = vmatprep.subr.mxu0 0.0
    %297 = vmatpush1.msra.mxu0 %v107
    %298 = vmatprep.subr.mxu0 0.0
    %299 = vmatpush2.msra.mxu0 0.0
    %300 = vmatprep.subr.mxu0 0.0
    %301 = vmatpush2.msra.mxu0 0.0
    %302 = vmatprep.subr.mxu0 0.0
    %303 = vmatpush2.msra.mxu0 0.0
    %304 = vmatprep.subr.mxu0 0.0
    %305 = vmatpush2.msra.mxu0 0.0
    %306 = vmatprep.subr.mxu0 0.0
    %307 = vmatpush2.msra.mxu0 0.0
    %308 = vmatprep.subr.mxu0 0.0
    %309 = vmatpush2.msra.mxu0 0.0
    %310 = vmatprep.subr.mxu0 0.0
    %311 = vmatpush2.msra.mxu0 0.0
    %312 = vmatprep.subr.mxu0 0.0
    %313 = vmatpush2.msra.mxu0 0.0
    %314 = vmatprep.subr.mxu0 0.0
    %315 = vmatpush2.msra.mxu0 0.0
    %316 = vmatprep.subr.mxu0 0.0
    %317 = vmatpush2.msra.mxu0 0.0
    %318 = vmatprep.subr.mxu0 0.0
    %319 = vmatpush2.msra.mxu0 0.0
    %320 = vmatprep.subr.mxu0 0.0
    %321 = vmatpush2.msra.mxu0 0.0
    %322 = vmatprep.subr.mxu0 0.0
    %323 = vmatpush2.msra.mxu0 0.0
    %324 = vmatprep.subr.mxu0 0.0
    %325 = vmatpush2.msra.mxu0 0.0
    %326 = vmatprep.subr.mxu0 0.0
    %327 = vmatpush2.msra.mxu0 0.0
    %328 = vmatprep.subr.mxu0 0.0
    %329 = vmatpush2.msra.mxu0 0.0
    %330 = vmatprep.mubr.f32.mxu0 0.0
    %331 = vmatmul.mubr.f32.gmra.mxu0 %v97
    %v332 = vpop.f32.mrf.mxu0
    %v333 = vadd.f32 0.0, %v332
    %v334 = vpop.f32.mrf.mxu0
    %335 = vmatprep.mubr.f32.mxu0 0.0
    %336 = vmatmul.mubr.f32.gmra.mxu0 %v98
    %v337 = vpop.f32.mrf.mxu0
    %v338 = vadd.f32 0.0, %v337
    %v339 = vpop.f32.mrf.mxu0
    %340 = vmatprep.mubr.f32.mxu0 0.0
    %341 = vmatmul.mubr.f32.gmra.mxu0 %v99
    %v342 = vpop.f32.mrf.mxu0
    %v343 = vadd.f32 0.0, %v342
    %v344 = vpop.f32.mrf.mxu0
    %345 = vmatprep.mubr.f32.mxu0 0.0
    %346 = vmatmul.mubr.f32.gmra.mxu0 %v100
    %v347 = vpop.f32.mrf.mxu0
    %v348 = vadd.f32 0.0, %v347
    %v349 = vpop.f32.mrf.mxu0
    %350 = vmatprep.mubr.f32.mxu0 0.0
    %351 = vmatmul.mubr.f32.gmra.mxu0 %v101
    %v352 = vpop.f32.mrf.mxu0
    %v353 = vadd.f32 0.0, %v352
    %v354 = vpop.f32.mrf.mxu0
    %355 = vmatprep.mubr.f32.mxu0 0.0
    %356 = vmatmul.mubr.f32.gmra.mxu0 %v102
    %v357 = vpop.f32.mrf.mxu0
    %v358 = vadd.f32 0.0, %v357
    %v359 = vpop.f32.mrf.mxu0
    %360 = vmatprep.mubr.f32.mxu0 0.0
    %361 = vmatmul.mubr.f32.gmra.mxu0 %v103
    %v362 = vpop.f32.mrf.mxu0
    %v363 = vadd.f32 0.0, %v362
    %v364 = vpop.f32.mrf.mxu0
    %365 = vmatprep.mubr.f32.mxu0 0.0
    %366 = vmatmul.mubr.f32.gmra.mxu0 %v104
    %v367 = vpop.f32.mrf.mxu0
    %v368 = vadd.f32 0.0, %v367
    %v369 = vpop.f32.mrf.mxu0
    %370 = vdwg.mxu0
    %v371 = vld [vmem:[#allocation2 + $0x300] sm:$0xff]
    %v372 = vld [vmem:[#allocation2 + $0x308] sm:$0xff]
    %v373 = vld [vmem:[#allocation2 + $0x310] sm:$0xff]
    %v374 = vld [vmem:[#allocation2 + $0x318] sm:$0xff]
    %v375 = vld [vmem:[#allocation2 + $0x320] sm:$0xff]
    %v376 = vld [vmem:[#allocation2 + $0x328] sm:$0xff]
    %v377 = vld [vmem:[#allocation2 + $0x330] sm:$0xff]
    %v378 = vld [vmem:[#allocation2 + $0x338] sm:$0xff]
    %v379 = vld [vmem:[#allocation2 + $0x340] sm:$0xff]
    %v380 = vld [vmem:[#allocation2 + $0x348] sm:$0xff]
    %v381 = vld [vmem:[#allocation2 + $0x350] sm:$0xff]
    %v382 = vld [vmem:[#allocation2 + $0x358] sm:$0xff]
    %v383 = vld [vmem:[#allocation2 + $0x360] sm:$0xff]
    %v384 = vld [vmem:[#allocation2 + $0x368] sm:$0xff]
    %v385 = vld [vmem:[#allocation2 + $0x370] sm:$0xff]
    %v386 = vld [vmem:[#allocation2 + $0x378] sm:$0xff]
    %v387 = vld [vmem:[#allocation2 + $0x380] sm:$0xff]
    %v388 = vld [vmem:[#allocation2 + $0x388] sm:$0xff]
    %v389 = vld [vmem:[#allocation2 + $0x390] sm:$0xff]
    %v390 = vld [vmem:[#allocation2 + $0x398] sm:$0xff]
    %v391 = vld [vmem:[#allocation2 + $0x3a0] sm:$0xff]
    %v392 = vld [vmem:[#allocation2 + $0x3a8] sm:$0xff]
    %v393 = vld [vmem:[#allocation2 + $0x3b0] sm:$0xff]
    %v394 = vld [vmem:[#allocation2 + $0x3b8] sm:$0xff]
    %v395 = vld [vmem:[#allocation2 + $0x3c0] sm:$0xff]
    %v396 = vld [vmem:[#allocation2 + $0x3c8] sm:$0xff]
    %v397 = vld [vmem:[#allocation2 + $0x3d0] sm:$0xff]
    %v398 = vld [vmem:[#allocation2 + $0x3d8] sm:$0xff]
    %v399 = vld [vmem:[#allocation2 + $0x3e0] sm:$0xff]
    %v400 = vld [vmem:[#allocation2 + $0x3e8] sm:$0xff]
    %v401 = vld [vmem:[#allocation2 + $0x3f0] sm:$0xff]
    %v402 = vld [vmem:[#allocation2 + $0x3f8] sm:$0xff]
    %v403 = vld [vmem:[#allocation2 + $0x400] sm:$0xff]
    %v404 = vld [vmem:[#allocation2 + $0x408] sm:$0xff]
    %v405 = vld [vmem:[#allocation2 + $0x410] sm:$0xff]
    %v406 = vld [vmem:[#allocation2 + $0x418] sm:$0xff]
    %v407 = vld [vmem:[#allocation2 + $0x420] sm:$0xff]
    %v408 = vld [vmem:[#allocation2 + $0x428] sm:$0xff]
    %v409 = vld [vmem:[#allocation2 + $0x430] sm:$0xff]
    %v410 = vld [vmem:[#allocation2 + $0x438] sm:$0xff]
    %v411 = vld [vmem:[#allocation2 + $0x440] sm:$0xff]
    %v412 = vld [vmem:[#allocation2 + $0x448] sm:$0xff]
    %v413 = vld [vmem:[#allocation2 + $0x450] sm:$0xff]
    %v414 = vld [vmem:[#allocation2 + $0x458] sm:$0xff]
    %v415 = vld [vmem:[#allocation2 + $0x460] sm:$0xff]
    %v416 = vld [vmem:[#allocation2 + $0x468] sm:$0xff]
    %v417 = vld [vmem:[#allocation2 + $0x470] sm:$0xff]
    %v418 = vld [vmem:[#allocation2 + $0x478] sm:$0xff]
    %419 = vmatprep.subr.mxu0 %v417
    %420 = vmatpush1.msra.mxu0 %v416
    %421 = vmatprep.subr.mxu0 %v414
    %422 = vmatpush1.msra.mxu0 %v413
    %423 = vmatprep.subr.mxu0 %v411
    %424 = vmatpush1.msra.mxu0 %v410
    %425 = vmatprep.subr.mxu0 %v408
    %426 = vmatpush1.msra.mxu0 %v407
    %427 = vmatprep.subr.mxu0 %v405
    %428 = vmatpush1.msra.mxu0 %v404
    %429 = vmatprep.subr.mxu0 %v402
    %430 = vmatpush1.msra.mxu0 %v401
    %431 = vmatprep.subr.mxu0 %v399
    %432 = vmatpush1.msra.mxu0 %v398
    %433 = vmatprep.subr.mxu0 %v396
    %434 = vmatpush1.msra.mxu0 %v395
    %435 = vmatprep.subr.mxu0 %v393
    %436 = vmatpush1.msra.mxu0 %v392
    %437 = vmatprep.subr.mxu0 %v390
    %438 = vmatpush1.msra.mxu0 %v389
    %439 = vmatprep.subr.mxu0 %v387
    %440 = vmatpush1.msra.mxu0 %v386
    %441 = vmatprep.subr.mxu0 %v384
    %442 = vmatpush1.msra.mxu0 %v383
    %443 = vmatprep.subr.mxu0 %v381
    %444 = vmatpush1.msra.mxu0 %v380
    %445 = vmatprep.subr.mxu0 %v378
    %446 = vmatpush1.msra.mxu0 %v377
    %447 = vmatprep.subr.mxu0 %v375
    %448 = vmatpush1.msra.mxu0 %v374
    %449 = vmatprep.subr.mxu0 %v372
    %450 = vmatpush1.msra.mxu0 %v371
    %451 = vmatprep.subr.mxu0 0.0
    %452 = vmatpush2.msra.mxu0 0.0
    %453 = vmatprep.subr.mxu0 0.0
    %454 = vmatpush2.msra.mxu0 0.0
    %455 = vmatprep.subr.mxu0 0.0
    %456 = vmatpush2.msra.mxu0 0.0
    %457 = vmatprep.subr.mxu0 0.0
    %458 = vmatpush2.msra.mxu0 0.0
    %459 = vmatprep.subr.mxu0 0.0
    %460 = vmatpush2.msra.mxu0 0.0
    %461 = vmatprep.subr.mxu0 0.0
    %462 = vmatpush2.msra.mxu0 0.0
    %463 = vmatprep.subr.mxu0 0.0
    %464 = vmatpush2.msra.mxu0 0.0
    %465 = vmatprep.subr.mxu0 0.0
    %466 = vmatpush2.msra.mxu0 0.0
    %467 = vmatprep.subr.mxu0 0.0
    %468 = vmatpush2.msra.mxu0 0.0
    %469 = vmatprep.subr.mxu0 0.0
    %470 = vmatpush2.msra.mxu0 0.0
    %471 = vmatprep.subr.mxu0 0.0
    %472 = vmatpush2.msra.mxu0 0.0
    %473 = vmatprep.subr.mxu0 0.0
    %474 = vmatpush2.msra.mxu0 0.0
    %475 = vmatprep.subr.mxu0 0.0
    %476 = vmatpush2.msra.mxu0 0.0
    %477 = vmatprep.subr.mxu0 0.0
    %478 = vmatpush2.msra.mxu0 0.0
    %479 = vmatprep.subr.mxu0 0.0
    %480 = vmatpush2.msra.mxu0 0.0
    %481 = vmatprep.subr.mxu0 0.0
    %482 = vmatpush2.msra.mxu0 0.0
    %483 = vmatprep.mubr.f32.mxu0 0.0
    %484 = vmatmul.mubr.f32.gmra.mxu0 0.0
    %v485 = vpop.f32.mrf.mxu0
    %v486 = vadd.f32 0.0, %v485
    %v487 = vpop.f32.mrf.mxu0
    %v488 = vadd.f32 0.0, %v487
    %489 = vdwg.mxu0
    %490 = vmatprep.subr.mxu0 0.0
    %491 = vmatpush1.msra.mxu0 %v418
    %492 = vmatprep.subr.mxu0 0.0
    %493 = vmatpush1.msra.mxu0 %v415
    %494 = vmatprep.subr.mxu0 0.0
    %495 = vmatpush1.msra.mxu0 %v412
    %496 = vmatprep.subr.mxu0 0.0
    %497 = vmatpush1.msra.mxu0 %v409
    %498 = vmatprep.subr.mxu0 0.0
    %499 = vmatpush1.msra.mxu0 %v406
    %500 = vmatprep.subr.mxu0 0.0
    %501 = vmatpush1.msra.mxu0 %v403
    %502 = vmatprep.subr.mxu0 0.0
    %503 = vmatpush1.msra.mxu0 %v400
    %504 = vmatprep.subr.mxu0 0.0
    %505 = vmatpush1.msra.mxu0 %v397
    %506 = vmatprep.subr.mxu0 0.0
    %507 = vmatpush1.msra.mxu0 %v394
    %508 = vmatprep.subr.mxu0 0.0
    %509 = vmatpush1.msra.mxu0 %v391
    %510 = vmatprep.subr.mxu0 0.0
    %511 = vmatpush1.msra.mxu0 %v388
    %512 = vmatprep.subr.mxu0 0.0
    %513 = vmatpush1.msra.mxu0 %v385
    %514 = vmatprep.subr.mxu0 0.0
    %515 = vmatpush1.msra.mxu0 %v382
    %516 = vmatprep.subr.mxu0 0.0
    %517 = vmatpush1.msra.mxu0 %v379
    %518 = vmatprep.subr.mxu0 0.0
    %519 = vmatpush1.msra.mxu0 %v376
    %520 = vmatprep.subr.mxu0 0.0
    %521 = vmatpush1.msra.mxu0 %v373
    %522 = vmatprep.subr.mxu0 0.0
    %523 = vmatpush2.msra.mxu0 0.0
    %524 = vmatprep.subr.mxu0 0.0
    %525 = vmatpush2.msra.mxu0 0.0
    %526 = vmatprep.subr.mxu0 0.0
    %527 = vmatpush2.msra.mxu0 0.0
    %528 = vmatprep.subr.mxu0 0.0
    %529 = vmatpush2.msra.mxu0 0.0
    %530 = vmatprep.subr.mxu0 0.0
    %531 = vmatpush2.msra.mxu0 0.0
    %532 = vmatprep.subr.mxu0 0.0
    %533 = vmatpush2.msra.mxu0 0.0
    %534 = vmatprep.subr.mxu0 0.0
    %535 = vmatpush2.msra.mxu0 0.0
    %536 = vmatprep.subr.mxu0 0.0
    %537 = vmatpush2.msra.mxu0 0.0
    %538 = vmatprep.subr.mxu0 0.0
    %539 = vmatpush2.msra.mxu0 0.0
    %540 = vmatprep.subr.mxu0 0.0
    %541 = vmatpush2.msra.mxu0 0.0
    %542 = vmatprep.subr.mxu0 0.0
    %543 = vmatpush2.msra.mxu0 0.0
    %544 = vmatprep.subr.mxu0 0.0
    %545 = vmatpush2.msra.mxu0 0.0
    %546 = vmatprep.subr.mxu0 0.0
    %547 = vmatpush2.msra.mxu0 0.0
    %548 = vmatprep.subr.mxu0 0.0
    %549 = vmatpush2.msra.mxu0 0.0
    %550 = vmatprep.subr.mxu0 0.0
    %551 = vmatpush2.msra.mxu0 0.0
    %552 = vmatprep.subr.mxu0 0.0
    %553 = vmatpush2.msra.mxu0 0.0
    %554 = vmatprep.mubr.f32.mxu0 0.0
    %555 = vmatmul.mubr.f32.gmra.mxu0 0.0
    %v556 = vpop.f32.mrf.mxu0
    %v557 = vadd.f32 0.0, %v556
    %v558 = vpop.f32.mrf.mxu0
    %559 = vdwg.mxu0
    %v560 = vadd.f32 %v220, %v486
    %v561 = vmul.f32 %v560, 0.5
    %v562 = vtanh.pop %v561
    %v563 = vadd.f32 %v562, 1.0
    %v564 = vmul.f32 %v563, 0.5
    %v565 = vadd.f32 %v222, %v488
    %v566 = vmul.f32 %v565, 0.5
    %v567 = vtanh.pop %v566
    %v568 = vadd.f32 %v567, 1.0
    %v569 = vmul.f32 %v568, 0.5
    %v570 = vadd.f32 %v557, %v43
    %v571 = vmul.f32 %v564, %v570
    %v572 = vadd.f32 %v333, %v571
    %v573 = vtanh.pop %v572
    %v574 = vsub.f32 1.0, %v569
    %v575 = vmul.f32 %v574, %v573
    %v576 = vmul.f32 %v569, 0.0
    %v577 = vadd.f32 %v575, %v576
    %578 = vmatprep.subr.mxu0 %v417
    %579 = vmatpush1.msra.mxu0 %v416
    %580 = vmatprep.subr.mxu0 %v414
    %581 = vmatpush1.msra.mxu0 %v413
    %582 = vmatprep.subr.mxu0 %v411
    %583 = vmatpush1.msra.mxu0 %v410
    %584 = vmatprep.subr.mxu0 %v408
    %585 = vmatpush1.msra.mxu0 %v407
    %586 = vmatprep.subr.mxu0 %v405
    %587 = vmatpush1.msra.mxu0 %v404
    %588 = vmatprep.subr.mxu0 %v402
    %589 = vmatpush1.msra.mxu0 %v401
    %590 = vmatprep.subr.mxu0 %v399
    %591 = vmatpush1.msra.mxu0 %v398
    %592 = vmatprep.subr.mxu0 %v396
    %593 = vmatpush1.msra.mxu0 %v395
    %594 = vmatprep.subr.mxu0 %v393
    %595 = vmatpush1.msra.mxu0 %v392
    %596 = vmatprep.subr.mxu0 %v390
    %597 = vmatpush1.msra.mxu0 %v389
    %598 = vmatprep.subr.mxu0 %v387
    %599 = vmatpush1.msra.mxu0 %v386
    %600 = vmatprep.subr.mxu0 %v384
    %601 = vmatpush1.msra.mxu0 %v383
    %602 = vmatprep.subr.mxu0 %v381
    %603 = vmatpush1.msra.mxu0 %v380
    %604 = vmatprep.subr.mxu0 %v378
    %605 = vmatpush1.msra.mxu0 %v377
    %606 = vmatprep.subr.mxu0 %v375
    %607 = vmatpush1.msra.mxu0 %v374
    %608 = vmatprep.subr.mxu0 %v372
    %609 = vmatpush1.msra.mxu0 %v371
    %610 = vmatprep.subr.mxu0 0.0
    %611 = vmatpush2.msra.mxu0 0.0
    %612 = vmatprep.subr.mxu0 0.0
    %613 = vmatpush2.msra.mxu0 0.0
    %614 = vmatprep.subr.mxu0 0.0
    %615 = vmatpush2.msra.mxu0 0.0
    %616 = vmatprep.subr.mxu0 0.0
    %617 = vmatpush2.msra.mxu0 0.0
    %618 = vmatprep.subr.mxu0 0.0
    %619 = vmatpush2.msra.mxu0 0.0
    %620 = vmatprep.subr.mxu0 0.0
    %621 = vmatpush2.msra.mxu0 0.0
    %622 = vmatprep.subr.mxu0 0.0
    %623 = vmatpush2.msra.mxu0 0.0
    %624 = vmatprep.subr.mxu0 0.0
    %625 = vmatpush2.msra.mxu0 0.0
    %626 = vmatprep.subr.mxu0 0.0
    %627 = vmatpush2.msra.mxu0 0.0
    %628 = vmatprep.subr.mxu0 0.0
    %629 = vmatpush2.msra.mxu0 0.0
    %630 = vmatprep.subr.mxu0 0.0
    %631 = vmatpush2.msra.mxu0 0.0
    %632 = vmatprep.subr.mxu0 0.0
    %633 = vmatpush2.msra.mxu0 0.0
    %634 = vmatprep.subr.mxu0 0.0
    %635 = vmatpush2.msra.mxu0 0.0
    %636 = vmatprep.subr.mxu0 0.0
    %637 = vmatpush2.msra.mxu0 0.0
    %638 = vmatprep.subr.mxu0 0.0
    %639 = vmatpush2.msra.mxu0 0.0
    %640 = vmatprep.subr.mxu0 0.0
    %641 = vmatpush2.msra.mxu0 0.0
    %642 = vmatprep.mubr.f32.mxu0 0.0
    %643 = vmatmul.mubr.f32.gmra.mxu0 %v577
    %v644 = vpop.f32.mrf.mxu0
    %v645 = vadd.f32 0.0, %v644
    %v646 = vpop.f32.mrf.mxu0
    %v647 = vadd.f32 0.0, %v646
    %648 = vdwg.mxu0
    %649 = vmatprep.subr.mxu0 0.0
    %650 = vmatpush1.msra.mxu0 %v418
    %651 = vmatprep.subr.mxu0 0.0
    %652 = vmatpush1.msra.mxu0 %v415
    %653 = vmatprep.subr.mxu0 0.0
    %654 = vmatpush1.msra.mxu0 %v412
    %655 = vmatprep.subr.mxu0 0.0
    %656 = vmatpush1.msra.mxu0 %v409
    %657 = vmatprep.subr.mxu0 0.0
    %658 = vmatpush1.msra.mxu0 %v406
    %659 = vmatprep.subr.mxu0 0.0
    %660 = vmatpush1.msra.mxu0 %v403
    %661 = vmatprep.subr.mxu0 0.0
    %662 = vmatpush1.msra.mxu0 %v400
    %663 = vmatprep.subr.mxu0 0.0
    %664 = vmatpush1.msra.mxu0 %v397
    %665 = vmatprep.subr.mxu0 0.0
    %666 = vmatpush1.msra.mxu0 %v394
    %667 = vmatprep.subr.mxu0 0.0
    %668 = vmatpush1.msra.mxu0 %v391
    %669 = vmatprep.subr.mxu0 0.0
    %670 = vmatpush1.msra.mxu0 %v388
    %671 = vmatprep.subr.mxu0 0.0
    %672 = vmatpush1.msra.mxu0 %v385
    %673 = vmatprep.subr.mxu0 0.0
    %674 = vmatpush1.msra.mxu0 %v382
    %675 = vmatprep.subr.mxu0 0.0
    %676 = vmatpush1.msra.mxu0 %v379
    %677 = vmatprep.subr.mxu0 0.0
    %678 = vmatpush1.msra.mxu0 %v376
    %679 = vmatprep.subr.mxu0 0.0
    %680 = vmatpush1.msra.mxu0 %v373
    %681 = vmatprep.subr.mxu0 0.0
    %682 = vmatpush2.msra.mxu0 0.0
    %683 = vmatprep.subr.mxu0 0.0
    %684 = vmatpush2.msra.mxu0 0.0
    %685 = vmatprep.subr.mxu0 0.0
    %686 = vmatpush2.msra.mxu0 0.0
    %687 = vmatprep.subr.mxu0 0.0
    %688 = vmatpush2.msra.mxu0 0.0
    %689 = vmatprep.subr.mxu0 0.0
    %690 = vmatpush2.msra.mxu0 0.0
    %691 = vmatprep.subr.mxu0 0.0
    %692 = vmatpush2.msra.mxu0 0.0
    %693 = vmatprep.subr.mxu0 0.0
    %694 = vmatpush2.msra.mxu0 0.0
    %695 = vmatprep.subr.mxu0 0.0
    %696 = vmatpush2.msra.mxu0 0.0
    %697 = vmatprep.subr.mxu0 0.0
    %698 = vmatpush2.msra.mxu0 0.0
    %699 = vmatprep.subr.mxu0 0.0
    %700 = vmatpush2.msra.mxu0 0.0
    %701 = vmatprep.subr.mxu0 0.0
    %702 = vmatpush2.msra.mxu0 0.0
    %703 = vmatprep.subr.mxu0 0.0
    %704 = vmatpush2.msra.mxu0 0.0
    %705 = vmatprep.subr.mxu0 0.0
    %706 = vmatpush2.msra.mxu0 0.0
    %707 = vmatprep.subr.mxu0 0.0
    %708 = vmatpush2.msra.mxu0 0.0
    %709 = vmatprep.subr.mxu0 0.0
    %710 = vmatpush2.msra.mxu0 0.0
    %711 = vmatprep.subr.mxu0 0.0
    %712 = vmatpush2.msra.mxu0 0.0
    %713 = vmatprep.mubr.f32.mxu0 0.0
    %714 = vmatmul.mubr.f32.gmra.mxu0 %v577
    %v715 = vpop.f32.mrf.mxu0
    %v716 = vadd.f32 0.0, %v715
    %v717 = vpop.f32.mrf.mxu0
    %718 = vdwg.mxu0
    %v719 = vadd.f32 %v226, %v645
    %v720 = vmul.f32 %v719, 0.5
    %v721 = vtanh.pop %v720
    %v722 = vadd.f32 %v721, 1.0
    %v723 = vmul.f32 %v722, 0.5
    %v724 = vadd.f32 %v228, %v647
    %v725 = vmul.f32 %v724, 0.5
    %v726 = vtanh.pop %v725
    %v727 = vadd.f32 %v726, 1.0
    %v728 = vmul.f32 %v727, 0.5
    %v729 = vadd.f32 %v716, %v43
    %v730 = vmul.f32 %v723, %v729
    %v731 = vadd.f32 %v338, %v730
    %v732 = vtanh.pop %v731
    %v733 = vsub.f32 1.0, %v728
    %v734 = vmul.f32 %v733, %v732
    %v735 = vmul.f32 %v728, %v577
    %v736 = vadd.f32 %v734, %v735
    %737 = vmatprep.subr.mxu0 %v417
    %738 = vmatpush1.msra.mxu0 %v416
    %739 = vmatprep.subr.mxu0 %v414
    %740 = vmatpush1.msra.mxu0 %v413
    %741 = vmatprep.subr.mxu0 %v411
    %742 = vmatpush1.msra.mxu0 %v410
    %743 = vmatprep.subr.mxu0 %v408
    %744 = vmatpush1.msra.mxu0 %v407
    %745 = vmatprep.subr.mxu0 %v405
    %746 = vmatpush1.msra.mxu0 %v404
    %747 = vmatprep.subr.mxu0 %v402
    %748 = vmatpush1.msra.mxu0 %v401
    %749 = vmatprep.subr.mxu0 %v399
    %750 = vmatpush1.msra.mxu0 %v398
    %751 = vmatprep.subr.mxu0 %v396
    %752 = vmatpush1.msra.mxu0 %v395
    %753 = vmatprep.subr.mxu0 %v393
    %754 = vmatpush1.msra.mxu0 %v392
    %755 = vmatprep.subr.mxu0 %v390
    %756 = vmatpush1.msra.mxu0 %v389
    %757 = vmatprep.subr.mxu0 %v387
    %758 = vmatpush1.msra.mxu0 %v386
    %759 = vmatprep.subr.mxu0 %v384
    %760 = vmatpush1.msra.mxu0 %v383
    %761 = vmatprep.subr.mxu0 %v381
    %762 = vmatpush1.msra.mxu0 %v380
    %763 = vmatprep.subr.mxu0 %v378
    %764 = vmatpush1.msra.mxu0 %v377
    %765 = vmatprep.subr.mxu0 %v375
    %766 = vmatpush1.msra.mxu0 %v374
    %767 = vmatprep.subr.mxu0 %v372
    %768 = vmatpush1.msra.mxu0 %v371
    %769 = vmatprep.subr.mxu0 0.0
    %770 = vmatpush2.msra.mxu0 0.0
    %771 = vmatprep.subr.mxu0 0.0
    %772 = vmatpush2.msra.mxu0 0.0
    %773 = vmatprep.subr.mxu0 0.0
    %774 = vmatpush2.msra.mxu0 0.0
    %775 = vmatprep.subr.mxu0 0.0
    %776 = vmatpush2.msra.mxu0 0.0
    %777 = vmatprep.subr.mxu0 0.0
    %778 = vmatpush2.msra.mxu0 0.0
    %779 = vmatprep.subr.mxu0 0.0
    %780 = vmatpush2.msra.mxu0 0.0
    %781 = vmatprep.subr.mxu0 0.0
    %782 = vmatpush2.msra.mxu0 0.0
    %783 = vmatprep.subr.mxu0 0.0
    %784 = vmatpush2.msra.mxu0 0.0
    %785 = vmatprep.subr.mxu0 0.0
    %786 = vmatpush2.msra.mxu0 0.0
    %787 = vmatprep.subr.mxu0 0.0
    %788 = vmatpush2.msra.mxu0 0.0
    %789 = vmatprep.subr.mxu0 0.0
    %790 = vmatpush2.msra.mxu0 0.0
    %791 = vmatprep.subr.mxu0 0.0
    %792 = vmatpush2.msra.mxu0 0.0
    %793 = vmatprep.subr.mxu0 0.0
    %794 = vmatpush2.msra.mxu0 0.0
    %795 = vmatprep.subr.mxu0 0.0
    %796 = vmatpush2.msra.mxu0 0.0
    %797 = vmatprep.subr.mxu0 0.0
    %798 = vmatpush2.msra.mxu0 0.0
    %799 = vmatprep.subr.mxu0 0.0
    %800 = vmatpush2.msra.mxu0 0.0
    %801 = vmatprep.mubr.f32.mxu0 0.0
    %802 = vmatmul.mubr.f32.gmra.mxu0 %v736
    %v803 = vpop.f32.mrf.mxu0
    %v804 = vadd.f32 0.0, %v803
    %v805 = vpop.f32.mrf.mxu0
    %v806 = vadd.f32 0.0, %v805
    %807 = vdwg.mxu0
    %808 = vmatprep.subr.mxu0 0.0
    %809 = vmatpush1.msra.mxu0 %v418
    %810 = vmatprep.subr.mxu0 0.0
    %811 = vmatpush1.msra.mxu0 %v415
    %812 = vmatprep.subr.mxu0 0.0
    %813 = vmatpush1.msra.mxu0 %v412
    %814 = vmatprep.subr.mxu0 0.0
    %815 = vmatpush1.msra.mxu0 %v409
    %816 = vmatprep.subr.mxu0 0.0
    %817 = vmatpush1.msra.mxu0 %v406
    %818 = vmatprep.subr.mxu0 0.0
    %819 = vmatpush1.msra.mxu0 %v403
    %820 = vmatprep.subr.mxu0 0.0
    %821 = vmatpush1.msra.mxu0 %v400
    %822 = vmatprep.subr.mxu0 0.0
    %823 = vmatpush1.msra.mxu0 %v397
    %824 = vmatprep.subr.mxu0 0.0
    %825 = vmatpush1.msra.mxu0 %v394
    %826 = vmatprep.subr.mxu0 0.0
    %827 = vmatpush1.msra.mxu0 %v391
    %828 = vmatprep.subr.mxu0 0.0
    %829 = vmatpush1.msra.mxu0 %v388
    %830 = vmatprep.subr.mxu0 0.0
    %831 = vmatpush1.msra.mxu0 %v385
    %832 = vmatprep.subr.mxu0 0.0
    %833 = vmatpush1.msra.mxu0 %v382
    %834 = vmatprep.subr.mxu0 0.0
    %835 = vmatpush1.msra.mxu0 %v379
    %836 = vmatprep.subr.mxu0 0.0
    %837 = vmatpush1.msra.mxu0 %v376
    %838 = vmatprep.subr.mxu0 0.0
    %839 = vmatpush1.msra.mxu0 %v373
    %840 = vmatprep.subr.mxu0 0.0
    %841 = vmatpush2.msra.mxu0 0.0
    %842 = vmatprep.subr.mxu0 0.0
    %843 = vmatpush2.msra.mxu0 0.0
    %844 = vmatprep.subr.mxu0 0.0
    %845 = vmatpush2.msra.mxu0 0.0
    %846 = vmatprep.subr.mxu0 0.0
    %847 = vmatpush2.msra.mxu0 0.0
    %848 = vmatprep.subr.mxu0 0.0
    %849 = vmatpush2.msra.mxu0 0.0
    %850 = vmatprep.subr.mxu0 0.0
    %851 = vmatpush2.msra.mxu0 0.0
    %852 = vmatprep.subr.mxu0 0.0
    %853 = vmatpush2.msra.mxu0 0.0
    %854 = vmatprep.subr.mxu0 0.0
    %855 = vmatpush2.msra.mxu0 0.0
    %856 = vmatprep.subr.mxu0 0.0
    %857 = vmatpush2.msra.mxu0 0.0
    %858 = vmatprep.subr.mxu0 0.0
    %859 = vmatpush2.msra.mxu0 0.0
    %860 = vmatprep.subr.mxu0 0.0
    %861 = vmatpush2.msra.mxu0 0.0
    %862 = vmatprep.subr.mxu0 0.0
    %863 = vmatpush2.msra.mxu0 0.0
    %864 = vmatprep.subr.mxu0 0.0
    %865 = vmatpush2.msra.mxu0 0.0
    %866 = vmatprep.subr.mxu0 0.0
    %867 = vmatpush2.msra.mxu0 0.0
    %868 = vmatprep.subr.mxu0 0.0
    %869 = vmatpush2.msra.mxu0 0.0
    %870 = vmatprep.subr.mxu0 0.0
    %871 = vmatpush2.msra.mxu0 0.0
    %872 = vmatprep.mubr.f32.mxu0 0.0
    %873 = vmatmul.mubr.f32.gmra.mxu0 %v736
    %v874 = vpop.f32.mrf.mxu0
    %v875 = vadd.f32 0.0, %v874
    %v876 = vpop.f32.mrf.mxu0
    %877 = vdwg.mxu0
    %v878 = vadd.f32 %v232, %v804
    %v879 = vmul.f32 %v878, 0.5
    %v880 = vtanh.pop %v879
    %v881 = vadd.f32 %v880, 1.0
    %v882 = vmul.f32 %v881, 0.5
    %v883 = vadd.f32 %v234, %v806
    %v884 = vmul.f32 %v883, 0.5
    %v885 = vtanh.pop %v884
    %v886 = vadd.f32 %v885, 1.0
    %v887 = vmul.f32 %v886, 0.5
    %v888 = vadd.f32 %v875, %v43
    %v889 = vmul.f32 %v882, %v888
    %v890 = vadd.f32 %v343, %v889
    %v891 = vtanh.pop %v890
    %v892 = vsub.f32 1.0, %v887
    %v893 = vmul.f32 %v892, %v891
    %v894 = vmul.f32 %v887, %v736
    %v895 = vadd.f32 %v893, %v894
    %896 = vmatprep.subr.mxu0 %v417
    %897 = vmatpush1.msra.mxu0 %v416
    %898 = vmatprep.subr.mxu0 %v414
    %899 = vmatpush1.msra.mxu0 %v413
    %900 = vmatprep.subr.mxu0 %v411
    %901 = vmatpush1.msra.mxu0 %v410
    %902 = vmatprep.subr.mxu0 %v408
    %903 = vmatpush1.msra.mxu0 %v407
    %904 = vmatprep.subr.mxu0 %v405
    %905 = vmatpush1.msra.mxu0 %v404
    %906 = vmatprep.subr.mxu0 %v402
    %907 = vmatpush1.msra.mxu0 %v401
    %908 = vmatprep.subr.mxu0 %v399
    %909 = vmatpush1.msra.mxu0 %v398
    %910 = vmatprep.subr.mxu0 %v396
    %911 = vmatpush1.msra.mxu0 %v395
    %912 = vmatprep.subr.mxu0 %v393
    %913 = vmatpush1.msra.mxu0 %v392
    %914 = vmatprep.subr.mxu0 %v390
    %915 = vmatpush1.msra.mxu0 %v389
    %916 = vmatprep.subr.mxu0 %v387
    %917 = vmatpush1.msra.mxu0 %v386
    %918 = vmatprep.subr.mxu0 %v384
    %919 = vmatpush1.msra.mxu0 %v383
    %920 = vmatprep.subr.mxu0 %v381
    %921 = vmatpush1.msra.mxu0 %v380
    %922 = vmatprep.subr.mxu0 %v378
    %923 = vmatpush1.msra.mxu0 %v377
    %924 = vmatprep.subr.mxu0 %v375
    %925 = vmatpush1.msra.mxu0 %v374
    %926 = vmatprep.subr.mxu0 %v372
    %927 = vmatpush1.msra.mxu0 %v371
    %928 = vmatprep.subr.mxu0 0.0
    %929 = vmatpush2.msra.mxu0 0.0
    %930 = vmatprep.subr.mxu0 0.0
    %931 = vmatpush2.msra.mxu0 0.0
    %932 = vmatprep.subr.mxu0 0.0
    %933 = vmatpush2.msra.mxu0 0.0
    %934 = vmatprep.subr.mxu0 0.0
    %935 = vmatpush2.msra.mxu0 0.0
    %936 = vmatprep.subr.mxu0 0.0
    %937 = vmatpush2.msra.mxu0 0.0
    %938 = vmatprep.subr.mxu0 0.0
    %939 = vmatpush2.msra.mxu0 0.0
    %940 = vmatprep.subr.mxu0 0.0
    %941 = vmatpush2.msra.mxu0 0.0
    %942 = vmatprep.subr.mxu0 0.0
    %943 = vmatpush2.msra.mxu0 0.0
    %944 = vmatprep.subr.mxu0 0.0
    %945 = vmatpush2.msra.mxu0 0.0
    %946 = vmatprep.subr.mxu0 0.0
    %947 = vmatpush2.msra.mxu0 0.0
    %948 = vmatprep.subr.mxu0 0.0
    %949 = vmatpush2.msra.mxu0 0.0
    %950 = vmatprep.subr.mxu0 0.0
    %951 = vmatpush2.msra.mxu0 0.0
    %952 = vmatprep.subr.mxu0 0.0
    %953 = vmatpush2.msra.mxu0 0.0
    %954 = vmatprep.subr.mxu0 0.0
    %955 = vmatpush2.msra.mxu0 0.0
    %956 = vmatprep.subr.mxu0 0.0
    %957 = vmatpush2.msra.mxu0 0.0
    %958 = vmatprep.subr.mxu0 0.0
    %959 = vmatpush2.msra.mxu0 0.0
    %960 = vmatprep.mubr.f32.mxu0 0.0
    %961 = vmatmul.mubr.f32.gmra.mxu0 %v895
    %v962 = vpop.f32.mrf.mxu0
    %v963 = vadd.f32 0.0, %v962
    %v964 = vpop.f32.mrf.mxu0
    %v965 = vadd.f32 0.0, %v964
    %966 = vdwg.mxu0
    %967 = vmatprep.subr.mxu0 0.0
    %968 = vmatpush1.msra.mxu0 %v418
    %969 = vmatprep.subr.mxu0 0.0
    %970 = vmatpush1.msra.mxu0 %v415
    %971 = vmatprep.subr.mxu0 0.0
    %972 = vmatpush1.msra.mxu0 %v412
    %973 = vmatprep.subr.mxu0 0.0
    %974 = vmatpush1.msra.mxu0 %v409
    %975 = vmatprep.subr.mxu0 0.0
    %976 = vmatpush1.msra.mxu0 %v406
    %977 = vmatprep.subr.mxu0 0.0
    %978 = vmatpush1.msra.mxu0 %v403
    %979 = vmatprep.subr.mxu0 0.0
    %980 = vmatpush1.msra.mxu0 %v400
    %981 = vmatprep.subr.mxu0 0.0
    %982 = vmatpush1.msra.mxu0 %v397
    %983 = vmatprep.subr.mxu0 0.0
    %984 = vmatpush1.msra.mxu0 %v394
    %985 = vmatprep.subr.mxu0 0.0
    %986 = vmatpush1.msra.mxu0 %v391
    %987 = vmatprep.subr.mxu0 0.0
    %988 = vmatpush1.msra.mxu0 %v388
    %989 = vmatprep.subr.mxu0 0.0
    %990 = vmatpush1.msra.mxu0 %v385
    %991 = vmatprep.subr.mxu0 0.0
    %992 = vmatpush1.msra.mxu0 %v382
    %993 = vmatprep.subr.mxu0 0.0
    %994 = vmatpush1.msra.mxu0 %v379
    %995 = vmatprep.subr.mxu0 0.0
    %996 = vmatpush1.msra.mxu0 %v376
    %997 = vmatprep.subr.mxu0 0.0
    %998 = vmatpush1.msra.mxu0 %v373
    %999 = vmatprep.subr.mxu0 0.0
    %1000 = vmatpush2.msra.mxu0 0.0
    %1001 = vmatprep.subr.mxu0 0.0
    %1002 = vmatpush2.msra.mxu0 0.0
    %1003 = vmatprep.subr.mxu0 0.0
    %1004 = vmatpush2.msra.mxu0 0.0
    %1005 = vmatprep.subr.mxu0 0.0
    %1006 = vmatpush2.msra.mxu0 0.0
    %1007 = vmatprep.subr.mxu0 0.0
    %1008 = vmatpush2.msra.mxu0 0.0
    %1009 = vmatprep.subr.mxu0 0.0
    %1010 = vmatpush2.msra.mxu0 0.0
    %1011 = vmatprep.subr.mxu0 0.0
    %1012 = vmatpush2.msra.mxu0 0.0
    %1013 = vmatprep.subr.mxu0 0.0
    %1014 = vmatpush2.msra.mxu0 0.0
    %1015 = vmatprep.subr.mxu0 0.0
    %1016 = vmatpush2.msra.mxu0 0.0
    %1017 = vmatprep.subr.mxu0 0.0
    %1018 = vmatpush2.msra.mxu0 0.0
    %1019 = vmatprep.subr.mxu0 0.0
    %1020 = vmatpush2.msra.mxu0 0.0
    %1021 = vmatprep.subr.mxu0 0.0
    %1022 = vmatpush2.msra.mxu0 0.0
    %1023 = vmatprep.subr.mxu0 0.0
    %1024 = vmatpush2.msra.mxu0 0.0
    %1025 = vmatprep.subr.mxu0 0.0
    %1026 = vmatpush2.msra.mxu0 0.0
    %1027 = vmatprep.subr.mxu0 0.0
    %1028 = vmatpush2.msra.mxu0 0.0
    %1029 = vmatprep.subr.mxu0 0.0
    %1030 = vmatpush2.msra.mxu0 0.0
    %1031 = vmatprep.mubr.f32.mxu0 0.0
    %1032 = vmatmul.mubr.f32.gmra.mxu0 %v895
    %v1033 = vpop.f32.mrf.mxu0
    %v1034 = vadd.f32 0.0, %v1033
    %v1035 = vpop.f32.mrf.mxu0
    %1036 = vdwg.mxu0
    %v1037 = vadd.f32 %v238, %v963
    %v1038 = vmul.f32 %v1037, 0.5
    %v1039 = vtanh.pop %v1038
    %v1040 = vadd.f32 %v1039, 1.0
    %v1041 = vmul.f32 %v1040, 0.5
    %v1042 = vadd.f32 %v240, %v965
    %v1043 = vmul.f32 %v1042, 0.5
    %v1044 = vtanh.pop %v1043
    %v1045 = vadd.f32 %v1044, 1.0
    %v1046 = vmul.f32 %v1045, 0.5
    %v1047 = vadd.f32 %v1034, %v43
    %v1048 = vmul.f32 %v1041, %v1047
    %v1049 = vadd.f32 %v348, %v1048
    %v1050 = vtanh.pop %v1049
    %v1051 = vsub.f32 1.0, %v1046
    %v1052 = vmul.f32 %v1051, %v1050
    %v1053 = vmul.f32 %v1046, %v895
    %v1054 = vadd.f32 %v1052, %v1053
    %1055 = vmatprep.subr.mxu0 %v417
    %1056 = vmatpush1.msra.mxu0 %v416
    %1057 = vmatprep.subr.mxu0 %v414
    %1058 = vmatpush1.msra.mxu0 %v413
    %1059 = vmatprep.subr.mxu0 %v411
    %1060 = vmatpush1.msra.mxu0 %v410
    %1061 = vmatprep.subr.mxu0 %v408
    %1062 = vmatpush1.msra.mxu0 %v407
    %1063 = vmatprep.subr.mxu0 %v405
    %1064 = vmatpush1.msra.mxu0 %v404
    %1065 = vmatprep.subr.mxu0 %v402
    %1066 = vmatpush1.msra.mxu0 %v401
    %1067 = vmatprep.subr.mxu0 %v399
    %1068 = vmatpush1.msra.mxu0 %v398
    %1069 = vmatprep.subr.mxu0 %v396
    %1070 = vmatpush1.msra.mxu0 %v395
    %1071 = vmatprep.subr.mxu0 %v393
    %1072 = vmatpush1.msra.mxu0 %v392
    %1073 = vmatprep.subr.mxu0 %v390
    %1074 = vmatpush1.msra.mxu0 %v389
    %1075 = vmatprep.subr.mxu0 %v387
    %1076 = vmatpush1.msra.mxu0 %v386
    %1077 = vmatprep.subr.mxu0 %v384
    %1078 = vmatpush1.msra.mxu0 %v383
    %1079 = vmatprep.subr.mxu0 %v381
    %1080 = vmatpush1.msra.mxu0 %v380
    %1081 = vmatprep.subr.mxu0 %v378
    %1082 = vmatpush1.msra.mxu0 %v377
    %1083 = vmatprep.subr.mxu0 %v375
    %1084 = vmatpush1.msra.mxu0 %v374
    %1085 = vmatprep.subr.mxu0 %v372
    %1086 = vmatpush1.msra.mxu0 %v371
    %1087 = vmatprep.subr.mxu0 0.0
    %1088 = vmatpush2.msra.mxu0 0.0
    %1089 = vmatprep.subr.mxu0 0.0
    %1090 = vmatpush2.msra.mxu0 0.0
    %1091 = vmatprep.subr.mxu0 0.0
    %1092 = vmatpush2.msra.mxu0 0.0
    %1093 = vmatprep.subr.mxu0 0.0
    %1094 = vmatpush2.msra.mxu0 0.0
    %1095 = vmatprep.subr.mxu0 0.0
    %1096 = vmatpush2.msra.mxu0 0.0
    %1097 = vmatprep.subr.mxu0 0.0
    %1098 = vmatpush2.msra.mxu0 0.0
    %1099 = vmatprep.subr.mxu0 0.0
    %1100 = vmatpush2.msra.mxu0 0.0
    %1101 = vmatprep.subr.mxu0 0.0
    %1102 = vmatpush2.msra.mxu0 0.0
    %1103 = vmatprep.subr.mxu0 0.0
    %1104 = vmatpush2.msra.mxu0 0.0
    %1105 = vmatprep.subr.mxu0 0.0
    %1106 = vmatpush2.msra.mxu0 0.0
    %1107 = vmatprep.subr.mxu0 0.0
    %1108 = vmatpush2.msra.mxu0 0.0
    %1109 = vmatprep.subr.mxu0 0.0
    %1110 = vmatpush2.msra.mxu0 0.0
    %1111 = vmatprep.subr.mxu0 0.0
    %1112 = vmatpush2.msra.mxu0 0.0
    %1113 = vmatprep.subr.mxu0 0.0
    %1114 = vmatpush2.msra.mxu0 0.0
    %1115 = vmatprep.subr.mxu0 0.0
    %1116 = vmatpush2.msra.mxu0 0.0
    %1117 = vmatprep.subr.mxu0 0.0
    %1118 = vmatpush2.msra.mxu0 0.0
    %1119 = vmatprep.mubr.f32.mxu0 0.0
    %1120 = vmatmul.mubr.f32.gmra.mxu0 %v1054
    %v1121 = vpop.f32.mrf.mxu0
    %v1122 = vadd.f32 0.0, %v1121
    %v1123 = vpop.f32.mrf.mxu0
    %v1124 = vadd.f32 0.0, %v1123
    %1125 = vdwg.mxu0
    %1126 = vmatprep.subr.mxu0 0.0
    %1127 = vmatpush1.msra.mxu0 %v418
    %1128 = vmatprep.subr.mxu0 0.0
    %1129 = vmatpush1.msra.mxu0 %v415
    %1130 = vmatprep.subr.mxu0 0.0
    %1131 = vmatpush1.msra.mxu0 %v412
    %1132 = vmatprep.subr.mxu0 0.0
    %1133 = vmatpush1.msra.mxu0 %v409
    %1134 = vmatprep.subr.mxu0 0.0
    %1135 = vmatpush1.msra.mxu0 %v406
    %1136 = vmatprep.subr.mxu0 0.0
    %1137 = vmatpush1.msra.mxu0 %v403
    %1138 = vmatprep.subr.mxu0 0.0
    %1139 = vmatpush1.msra.mxu0 %v400
    %1140 = vmatprep.subr.mxu0 0.0
    %1141 = vmatpush1.msra.mxu0 %v397
    %1142 = vmatprep.subr.mxu0 0.0
    %1143 = vmatpush1.msra.mxu0 %v394
    %1144 = vmatprep.subr.mxu0 0.0
    %1145 = vmatpush1.msra.mxu0 %v391
    %1146 = vmatprep.subr.mxu0 0.0
    %1147 = vmatpush1.msra.mxu0 %v388
    %1148 = vmatprep.subr.mxu0 0.0
    %1149 = vmatpush1.msra.mxu0 %v385
    %1150 = vmatprep.subr.mxu0 0.0
    %1151 = vmatpush1.msra.mxu0 %v382
    %1152 = vmatprep.subr.mxu0 0.0
    %1153 = vmatpush1.msra.mxu0 %v379
    %1154 = vmatprep.subr.mxu0 0.0
    %1155 = vmatpush1.msra.mxu0 %v376
    %1156 = vmatprep.subr.mxu0 0.0
    %1157 = vmatpush1.msra.mxu0 %v373
    %1158 = vmatprep.subr.mxu0 0.0
    %1159 = vmatpush2.msra.mxu0 0.0
    %1160 = vmatprep.subr.mxu0 0.0
    %1161 = vmatpush2.msra.mxu0 0.0
    %1162 = vmatprep.subr.mxu0 0.0
    %1163 = vmatpush2.msra.mxu0 0.0
    %1164 = vmatprep.subr.mxu0 0.0
    %1165 = vmatpush2.msra.mxu0 0.0
    %1166 = vmatprep.subr.mxu0 0.0
    %1167 = vmatpush2.msra.mxu0 0.0
    %1168 = vmatprep.subr.mxu0 0.0
    %1169 = vmatpush2.msra.mxu0 0.0
    %1170 = vmatprep.subr.mxu0 0.0
    %1171 = vmatpush2.msra.mxu0 0.0
    %1172 = vmatprep.subr.mxu0 0.0
    %1173 = vmatpush2.msra.mxu0 0.0
    %1174 = vmatprep.subr.mxu0 0.0
    %1175 = vmatpush2.msra.mxu0 0.0
    %1176 = vmatprep.subr.mxu0 0.0
    %1177 = vmatpush2.msra.mxu0 0.0
    %1178 = vmatprep.subr.mxu0 0.0
    %1179 = vmatpush2.msra.mxu0 0.0
    %1180 = vmatprep.subr.mxu0 0.0
    %1181 = vmatpush2.msra.mxu0 0.0
    %1182 = vmatprep.subr.mxu0 0.0
    %1183 = vmatpush2.msra.mxu0 0.0
    %1184 = vmatprep.subr.mxu0 0.0
    %1185 = vmatpush2.msra.mxu0 0.0
    %1186 = vmatprep.subr.mxu0 0.0
    %1187 = vmatpush2.msra.mxu0 0.0
    %1188 = vmatprep.subr.mxu0 0.0
    %1189 = vmatpush2.msra.mxu0 0.0
    %1190 = vmatprep.mubr.f32.mxu0 0.0
    %1191 = vmatmul.mubr.f32.gmra.mxu0 %v1054
    %v1192 = vpop.f32.mrf.mxu0
    %v1193 = vadd.f32 0.0, %v1192
    %v1194 = vpop.f32.mrf.mxu0
    %1195 = vdwg.mxu0
    %v1196 = vadd.f32 %v244, %v1122
    %v1197 = vmul.f32 %v1196, 0.5
    %v1198 = vtanh.pop %v1197
    %v1199 = vadd.f32 %v1198, 1.0
    %v1200 = vmul.f32 %v1199, 0.5
    %v1201 = vadd.f32 %v246, %v1124
    %v1202 = vmul.f32 %v1201, 0.5
    %v1203 = vtanh.pop %v1202
    %v1204 = vadd.f32 %v1203, 1.0
    %v1205 = vmul.f32 %v1204, 0.5
    %v1206 = vadd.f32 %v1193, %v43
    %v1207 = vmul.f32 %v1200, %v1206
    %v1208 = vadd.f32 %v353, %v1207
    %v1209 = vtanh.pop %v1208
    %v1210 = vsub.f32 1.0, %v1205
    %v1211 = vmul.f32 %v1210, %v1209
    %v1212 = vmul.f32 %v1205, %v1054
    %v1213 = vadd.f32 %v1211, %v1212
    %1214 = vmatprep.subr.mxu0 %v417
    %1215 = vmatpush1.msra.mxu0 %v416
    %1216 = vmatprep.subr.mxu0 %v414
    %1217 = vmatpush1.msra.mxu0 %v413
    %1218 = vmatprep.subr.mxu0 %v411
    %1219 = vmatpush1.msra.mxu0 %v410
    %1220 = vmatprep.subr.mxu0 %v408
    %1221 = vmatpush1.msra.mxu0 %v407
    %1222 = vmatprep.subr.mxu0 %v405
    %1223 = vmatpush1.msra.mxu0 %v404
    %1224 = vmatprep.subr.mxu0 %v402
    %1225 = vmatpush1.msra.mxu0 %v401
    %1226 = vmatprep.subr.mxu0 %v399
    %1227 = vmatpush1.msra.mxu0 %v398
    %1228 = vmatprep.subr.mxu0 %v396
    %1229 = vmatpush1.msra.mxu0 %v395
    %1230 = vmatprep.subr.mxu0 %v393
    %1231 = vmatpush1.msra.mxu0 %v392
    %1232 = vmatprep.subr.mxu0 %v390
    %1233 = vmatpush1.msra.mxu0 %v389
    %1234 = vmatprep.subr.mxu0 %v387
    %1235 = vmatpush1.msra.mxu0 %v386
    %1236 = vmatprep.subr.mxu0 %v384
    %1237 = vmatpush1.msra.mxu0 %v383
    %1238 = vmatprep.subr.mxu0 %v381
    %1239 = vmatpush1.msra.mxu0 %v380
    %1240 = vmatprep.subr.mxu0 %v378
    %1241 = vmatpush1.msra.mxu0 %v377
    %1242 = vmatprep.subr.mxu0 %v375
    %1243 = vmatpush1.msra.mxu0 %v374
    %1244 = vmatprep.subr.mxu0 %v372
    %1245 = vmatpush1.msra.mxu0 %v371
    %1246 = vmatprep.subr.mxu0 0.0
    %1247 = vmatpush2.msra.mxu0 0.0
    %1248 = vmatprep.subr.mxu0 0.0
    %1249 = vmatpush2.msra.mxu0 0.0
    %1250 = vmatprep.subr.mxu0 0.0
    %1251 = vmatpush2.msra.mxu0 0.0
    %1252 = vmatprep.subr.mxu0 0.0
    %1253 = vmatpush2.msra.mxu0 0.0
    %1254 = vmatprep.subr.mxu0 0.0
    %1255 = vmatpush2.msra.mxu0 0.0
    %1256 = vmatprep.subr.mxu0 0.0
    %1257 = vmatpush2.msra.mxu0 0.0
    %1258 = vmatprep.subr.mxu0 0.0
    %1259 = vmatpush2.msra.mxu0 0.0
    %1260 = vmatprep.subr.mxu0 0.0
    %1261 = vmatpush2.msra.mxu0 0.0
    %1262 = vmatprep.subr.mxu0 0.0
    %1263 = vmatpush2.msra.mxu0 0.0
    %1264 = vmatprep.subr.mxu0 0.0
    %1265 = vmatpush2.msra.mxu0 0.0
    %1266 = vmatprep.subr.mxu0 0.0
    %1267 = vmatpush2.msra.mxu0 0.0
    %1268 = vmatprep.subr.mxu0 0.0
    %1269 = vmatpush2.msra.mxu0 0.0
    %1270 = vmatprep.subr.mxu0 0.0
    %1271 = vmatpush2.msra.mxu0 0.0
    %1272 = vmatprep.subr.mxu0 0.0
    %1273 = vmatpush2.msra.mxu0 0.0
    %1274 = vmatprep.subr.mxu0 0.0
    %1275 = vmatpush2.msra.mxu0 0.0
    %1276 = vmatprep.subr.mxu0 0.0
    %1277 = vmatpush2.msra.mxu0 0.0
    %1278 = vmatprep.mubr.f32.mxu0 0.0
    %1279 = vmatmul.mubr.f32.gmra.mxu0 %v1213
    %v1280 = vpop.f32.mrf.mxu0
    %v1281 = vadd.f32 0.0, %v1280
    %v1282 = vpop.f32.mrf.mxu0
    %v1283 = vadd.f32 0.0, %v1282
    %1284 = vdwg.mxu0
    %1285 = vmatprep.subr.mxu0 0.0
    %1286 = vmatpush1.msra.mxu0 %v418
    %1287 = vmatprep.subr.mxu0 0.0
    %1288 = vmatpush1.msra.mxu0 %v415
    %1289 = vmatprep.subr.mxu0 0.0
    %1290 = vmatpush1.msra.mxu0 %v412
    %1291 = vmatprep.subr.mxu0 0.0
    %1292 = vmatpush1.msra.mxu0 %v409
    %1293 = vmatprep.subr.mxu0 0.0
    %1294 = vmatpush1.msra.mxu0 %v406
    %1295 = vmatprep.subr.mxu0 0.0
    %1296 = vmatpush1.msra.mxu0 %v403
    %1297 = vmatprep.subr.mxu0 0.0
    %1298 = vmatpush1.msra.mxu0 %v400
    %1299 = vmatprep.subr.mxu0 0.0
    %1300 = vmatpush1.msra.mxu0 %v397
    %1301 = vmatprep.subr.mxu0 0.0
    %1302 = vmatpush1.msra.mxu0 %v394
    %1303 = vmatprep.subr.mxu0 0.0
    %1304 = vmatpush1.msra.mxu0 %v391
    %1305 = vmatprep.subr.mxu0 0.0
    %1306 = vmatpush1.msra.mxu0 %v388
    %1307 = vmatprep.subr.mxu0 0.0
    %1308 = vmatpush1.msra.mxu0 %v385
    %1309 = vmatprep.subr.mxu0 0.0
    %1310 = vmatpush1.msra.mxu0 %v382
    %1311 = vmatprep.subr.mxu0 0.0
    %1312 = vmatpush1.msra.mxu0 %v379
    %1313 = vmatprep.subr.mxu0 0.0
    %1314 = vmatpush1.msra.mxu0 %v376
    %1315 = vmatprep.subr.mxu0 0.0
    %1316 = vmatpush1.msra.mxu0 %v373
    %1317 = vmatprep.subr.mxu0 0.0
    %1318 = vmatpush2.msra.mxu0 0.0
    %1319 = vmatprep.subr.mxu0 0.0
    %1320 = vmatpush2.msra.mxu0 0.0
    %1321 = vmatprep.subr.mxu0 0.0
    %1322 = vmatpush2.msra.mxu0 0.0
    %1323 = vmatprep.subr.mxu0 0.0
    %1324 = vmatpush2.msra.mxu0 0.0
    %1325 = vmatprep.subr.mxu0 0.0
    %1326 = vmatpush2.msra.mxu0 0.0
    %1327 = vmatprep.subr.mxu0 0.0
    %1328 = vmatpush2.msra.mxu0 0.0
    %1329 = vmatprep.subr.mxu0 0.0
    %1330 = vmatpush2.msra.mxu0 0.0
    %1331 = vmatprep.subr.mxu0 0.0
    %1332 = vmatpush2.msra.mxu0 0.0
    %1333 = vmatprep.subr.mxu0 0.0
    %1334 = vmatpush2.msra.mxu0 0.0
    %1335 = vmatprep.subr.mxu0 0.0
    %1336 = vmatpush2.msra.mxu0 0.0
    %1337 = vmatprep.subr.mxu0 0.0
    %1338 = vmatpush2.msra.mxu0 0.0
    %1339 = vmatprep.subr.mxu0 0.0
    %1340 = vmatpush2.msra.mxu0 0.0
    %1341 = vmatprep.subr.mxu0 0.0
    %1342 = vmatpush2.msra.mxu0 0.0
    %1343 = vmatprep.subr.mxu0 0.0
    %1344 = vmatpush2.msra.mxu0 0.0
    %1345 = vmatprep.subr.mxu0 0.0
    %1346 = vmatpush2.msra.mxu0 0.0
    %1347 = vmatprep.subr.mxu0 0.0
    %1348 = vmatpush2.msra.mxu0 0.0
    %1349 = vmatprep.mubr.f32.mxu0 0.0
    %1350 = vmatmul.mubr.f32.gmra.mxu0 %v1213
    %v1351 = vpop.f32.mrf.mxu0
    %v1352 = vadd.f32 0.0, %v1351
    %v1353 = vpop.f32.mrf.mxu0
    %1354 = vdwg.mxu0
    %v1355 = vadd.f32 %v250, %v1281
    %v1356 = vmul.f32 %v1355, 0.5
    %v1357 = vtanh.pop %v1356
    %v1358 = vadd.f32 %v1357, 1.0
    %v1359 = vmul.f32 %v1358, 0.5
    %v1360 = vadd.f32 %v252, %v1283
    %v1361 = vmul.f32 %v1360, 0.5
    %v1362 = vtanh.pop %v1361
    %v1363 = vadd.f32 %v1362, 1.0
    %v1364 = vmul.f32 %v1363, 0.5
    %v1365 = vadd.f32 %v1352, %v43
    %v1366 = vmul.f32 %v1359, %v1365
    %v1367 = vadd.f32 %v358, %v1366
    %v1368 = vtanh.pop %v1367
    %v1369 = vsub.f32 1.0, %v1364
    %v1370 = vmul.f32 %v1369, %v1368
    %v1371 = vmul.f32 %v1364, %v1213
    %v1372 = vadd.f32 %v1370, %v1371
    %1373 = vmatprep.subr.mxu0 %v417
    %1374 = vmatpush1.msra.mxu0 %v416
    %1375 = vmatprep.subr.mxu0 %v414
    %1376 = vmatpush1.msra.mxu0 %v413
    %1377 = vmatprep.subr.mxu0 %v411
    %1378 = vmatpush1.msra.mxu0 %v410
    %1379 = vmatprep.subr.mxu0 %v408
    %1380 = vmatpush1.msra.mxu0 %v407
    %1381 = vmatprep.subr.mxu0 %v405
    %1382 = vmatpush1.msra.mxu0 %v404
    %1383 = vmatprep.subr.mxu0 %v402
    %1384 = vmatpush1.msra.mxu0 %v401
    %1385 = vmatprep.subr.mxu0 %v399
    %1386 = vmatpush1.msra.mxu0 %v398
    %1387 = vmatprep.subr.mxu0 %v396
    %1388 = vmatpush1.msra.mxu0 %v395
    %1389 = vmatprep.subr.mxu0 %v393
    %1390 = vmatpush1.msra.mxu0 %v392
    %1391 = vmatprep.subr.mxu0 %v390
    %1392 = vmatpush1.msra.mxu0 %v389
    %1393 = vmatprep.subr.mxu0 %v387
    %1394 = vmatpush1.msra.mxu0 %v386
    %1395 = vmatprep.subr.mxu0 %v384
    %1396 = vmatpush1.msra.mxu0 %v383
    %1397 = vmatprep.subr.mxu0 %v381
    %1398 = vmatpush1.msra.mxu0 %v380
    %1399 = vmatprep.subr.mxu0 %v378
    %1400 = vmatpush1.msra.mxu0 %v377
    %1401 = vmatprep.subr.mxu0 %v375
    %1402 = vmatpush1.msra.mxu0 %v374
    %1403 = vmatprep.subr.mxu0 %v372
    %1404 = vmatpush1.msra.mxu0 %v371
    %1405 = vmatprep.subr.mxu0 0.0
    %1406 = vmatpush2.msra.mxu0 0.0
    %1407 = vmatprep.subr.mxu0 0.0
    %1408 = vmatpush2.msra.mxu0 0.0
    %1409 = vmatprep.subr.mxu0 0.0
    %1410 = vmatpush2.msra.mxu0 0.0
    %1411 = vmatprep.subr.mxu0 0.0
    %1412 = vmatpush2.msra.mxu0 0.0
    %1413 = vmatprep.subr.mxu0 0.0
    %1414 = vmatpush2.msra.mxu0 0.0
    %1415 = vmatprep.subr.mxu0 0.0
    %1416 = vmatpush2.msra.mxu0 0.0
    %1417 = vmatprep.subr.mxu0 0.0
    %1418 = vmatpush2.msra.mxu0 0.0
    %1419 = vmatprep.subr.mxu0 0.0
    %1420 = vmatpush2.msra.mxu0 0.0
    %1421 = vmatprep.subr.mxu0 0.0
    %1422 = vmatpush2.msra.mxu0 0.0
    %1423 = vmatprep.subr.mxu0 0.0
    %1424 = vmatpush2.msra.mxu0 0.0
    %1425 = vmatprep.subr.mxu0 0.0
    %1426 = vmatpush2.msra.mxu0 0.0
    %1427 = vmatprep.subr.mxu0 0.0
    %1428 = vmatpush2.msra.mxu0 0.0
    %1429 = vmatprep.subr.mxu0 0.0
    %1430 = vmatpush2.msra.mxu0 0.0
    %1431 = vmatprep.subr.mxu0 0.0
    %1432 = vmatpush2.msra.mxu0 0.0
    %1433 = vmatprep.subr.mxu0 0.0
    %1434 = vmatpush2.msra.mxu0 0.0
    %1435 = vmatprep.subr.mxu0 0.0
    %1436 = vmatpush2.msra.mxu0 0.0
    %1437 = vmatprep.mubr.f32.mxu0 0.0
    %1438 = vmatmul.mubr.f32.gmra.mxu0 %v1372
    %v1439 = vpop.f32.mrf.mxu0
    %v1440 = vadd.f32 0.0, %v1439
    %v1441 = vpop.f32.mrf.mxu0
    %v1442 = vadd.f32 0.0, %v1441
    %1443 = vdwg.mxu0
    %1444 = vmatprep.subr.mxu0 0.0
    %1445 = vmatpush1.msra.mxu0 %v418
    %1446 = vmatprep.subr.mxu0 0.0
    %1447 = vmatpush1.msra.mxu0 %v415
    %1448 = vmatprep.subr.mxu0 0.0
    %1449 = vmatpush1.msra.mxu0 %v412
    %1450 = vmatprep.subr.mxu0 0.0
    %1451 = vmatpush1.msra.mxu0 %v409
    %1452 = vmatprep.subr.mxu0 0.0
    %1453 = vmatpush1.msra.mxu0 %v406
    %1454 = vmatprep.subr.mxu0 0.0
    %1455 = vmatpush1.msra.mxu0 %v403
    %1456 = vmatprep.subr.mxu0 0.0
    %1457 = vmatpush1.msra.mxu0 %v400
    %1458 = vmatprep.subr.mxu0 0.0
    %1459 = vmatpush1.msra.mxu0 %v397
    %1460 = vmatprep.subr.mxu0 0.0
    %1461 = vmatpush1.msra.mxu0 %v394
    %1462 = vmatprep.subr.mxu0 0.0
    %1463 = vmatpush1.msra.mxu0 %v391
    %1464 = vmatprep.subr.mxu0 0.0
    %1465 = vmatpush1.msra.mxu0 %v388
    %1466 = vmatprep.subr.mxu0 0.0
    %1467 = vmatpush1.msra.mxu0 %v385
    %1468 = vmatprep.subr.mxu0 0.0
    %1469 = vmatpush1.msra.mxu0 %v382
    %1470 = vmatprep.subr.mxu0 0.0
    %1471 = vmatpush1.msra.mxu0 %v379
    %1472 = vmatprep.subr.mxu0 0.0
    %1473 = vmatpush1.msra.mxu0 %v376
    %1474 = vmatprep.subr.mxu0 0.0
    %1475 = vmatpush1.msra.mxu0 %v373
    %1476 = vmatprep.subr.mxu0 0.0
    %1477 = vmatpush2.msra.mxu0 0.0
    %1478 = vmatprep.subr.mxu0 0.0
    %1479 = vmatpush2.msra.mxu0 0.0
    %1480 = vmatprep.subr.mxu0 0.0
    %1481 = vmatpush2.msra.mxu0 0.0
    %1482 = vmatprep.subr.mxu0 0.0
    %1483 = vmatpush2.msra.mxu0 0.0
    %1484 = vmatprep.subr.mxu0 0.0
    %1485 = vmatpush2.msra.mxu0 0.0
    %1486 = vmatprep.subr.mxu0 0.0
    %1487 = vmatpush2.msra.mxu0 0.0
    %1488 = vmatprep.subr.mxu0 0.0
    %1489 = vmatpush2.msra.mxu0 0.0
    %1490 = vmatprep.subr.mxu0 0.0
    %1491 = vmatpush2.msra.mxu0 0.0
    %1492 = vmatprep.subr.mxu0 0.0
    %1493 = vmatpush2.msra.mxu0 0.0
    %1494 = vmatprep.subr.mxu0 0.0
    %1495 = vmatpush2.msra.mxu0 0.0
    %1496 = vmatprep.subr.mxu0 0.0
    %1497 = vmatpush2.msra.mxu0 0.0
    %1498 = vmatprep.subr.mxu0 0.0
    %1499 = vmatpush2.msra.mxu0 0.0
    %1500 = vmatprep.subr.mxu0 0.0
    %1501 = vmatpush2.msra.mxu0 0.0
    %1502 = vmatprep.subr.mxu0 0.0
    %1503 = vmatpush2.msra.mxu0 0.0
    %1504 = vmatprep.subr.mxu0 0.0
    %1505 = vmatpush2.msra.mxu0 0.0
    %1506 = vmatprep.subr.mxu0 0.0
    %1507 = vmatpush2.msra.mxu0 0.0
    %1508 = vmatprep.mubr.f32.mxu0 0.0
    %1509 = vmatmul.mubr.f32.gmra.mxu0 %v1372
    %v1510 = vpop.f32.mrf.mxu0
    %v1511 = vadd.f32 0.0, %v1510
    %v1512 = vpop.f32.mrf.mxu0
    %1513 = vdwg.mxu0
    %v1514 = vadd.f32 %v256, %v1440
    %v1515 = vmul.f32 %v1514, 0.5
    %v1516 = vtanh.pop %v1515
    %v1517 = vadd.f32 %v1516, 1.0
    %v1518 = vmul.f32 %v1517, 0.5
    %v1519 = vadd.f32 %v258, %v1442
    %v1520 = vmul.f32 %v1519, 0.5
    %v1521 = vtanh.pop %v1520
    %v1522 = vadd.f32 %v1521, 1.0
    %v1523 = vmul.f32 %v1522, 0.5
    %v1524 = vadd.f32 %v1511, %v43
    %v1525 = vmul.f32 %v1518, %v1524
    %v1526 = vadd.f32 %v363, %v1525
    %v1527 = vtanh.pop %v1526
    %v1528 = vsub.f32 1.0, %v1523
    %v1529 = vmul.f32 %v1528, %v1527
    %v1530 = vmul.f32 %v1523, %v1372
    %v1531 = vadd.f32 %v1529, %v1530
    %1532 = vmatprep.subr.mxu0 %v417
    %1533 = vmatpush1.msra.mxu0 %v416
    %1534 = vmatprep.subr.mxu0 %v414
    %1535 = vmatpush1.msra.mxu0 %v413
    %1536 = vmatprep.subr.mxu0 %v411
    %1537 = vmatpush1.msra.mxu0 %v410
    %1538 = vmatprep.subr.mxu0 %v408
    %1539 = vmatpush1.msra.mxu0 %v407
    %1540 = vmatprep.subr.mxu0 %v405
    %1541 = vmatpush1.msra.mxu0 %v404
    %1542 = vmatprep.subr.mxu0 %v402
    %1543 = vmatpush1.msra.mxu0 %v401
    %1544 = vmatprep.subr.mxu0 %v399
    %1545 = vmatpush1.msra.mxu0 %v398
    %1546 = vmatprep.subr.mxu0 %v396
    %1547 = vmatpush1.msra.mxu0 %v395
    %1548 = vmatprep.subr.mxu0 %v393
    %1549 = vmatpush1.msra.mxu0 %v392
    %1550 = vmatprep.subr.mxu0 %v390
    %1551 = vmatpush1.msra.mxu0 %v389
    %1552 = vmatprep.subr.mxu0 %v387
    %1553 = vmatpush1.msra.mxu0 %v386
    %1554 = vmatprep.subr.mxu0 %v384
    %1555 = vmatpush1.msra.mxu0 %v383
    %1556 = vmatprep.subr.mxu0 %v381
    %1557 = vmatpush1.msra.mxu0 %v380
    %1558 = vmatprep.subr.mxu0 %v378
    %1559 = vmatpush1.msra.mxu0 %v377
    %1560 = vmatprep.subr.mxu0 %v375
    %1561 = vmatpush1.msra.mxu0 %v374
    %1562 = vmatprep.subr.mxu0 %v372
    %1563 = vmatpush1.msra.mxu0 %v371
    %1564 = vmatprep.subr.mxu0 0.0
    %1565 = vmatpush2.msra.mxu0 0.0
    %1566 = vmatprep.subr.mxu0 0.0
    %1567 = vmatpush2.msra.mxu0 0.0
    %1568 = vmatprep.subr.mxu0 0.0
    %1569 = vmatpush2.msra.mxu0 0.0
    %1570 = vmatprep.subr.mxu0 0.0
    %1571 = vmatpush2.msra.mxu0 0.0
    %1572 = vmatprep.subr.mxu0 0.0
    %1573 = vmatpush2.msra.mxu0 0.0
    %1574 = vmatprep.subr.mxu0 0.0
    %1575 = vmatpush2.msra.mxu0 0.0
    %1576 = vmatprep.subr.mxu0 0.0
    %1577 = vmatpush2.msra.mxu0 0.0
    %1578 = vmatprep.subr.mxu0 0.0
    %1579 = vmatpush2.msra.mxu0 0.0
    %1580 = vmatprep.subr.mxu0 0.0
    %1581 = vmatpush2.msra.mxu0 0.0
    %1582 = vmatprep.subr.mxu0 0.0
    %1583 = vmatpush2.msra.mxu0 0.0
    %1584 = vmatprep.subr.mxu0 0.0
    %1585 = vmatpush2.msra.mxu0 0.0
    %1586 = vmatprep.subr.mxu0 0.0
    %1587 = vmatpush2.msra.mxu0 0.0
    %1588 = vmatprep.subr.mxu0 0.0
    %1589 = vmatpush2.msra.mxu0 0.0
    %1590 = vmatprep.subr.mxu0 0.0
    %1591 = vmatpush2.msra.mxu0 0.0
    %1592 = vmatprep.subr.mxu0 0.0
    %1593 = vmatpush2.msra.mxu0 0.0
    %1594 = vmatprep.subr.mxu0 0.0
    %1595 = vmatpush2.msra.mxu0 0.0
    %1596 = vmatprep.mubr.f32.mxu0 0.0
    %1597 = vmatmul.mubr.f32.gmra.mxu0 %v1531
    %v1598 = vpop.f32.mrf.mxu0
    %v1599 = vadd.f32 0.0, %v1598
    %v1600 = vpop.f32.mrf.mxu0
    %v1601 = vadd.f32 0.0, %v1600
    %1602 = vdwg.mxu0
    %1603 = vmatprep.subr.mxu0 0.0
    %1604 = vmatpush1.msra.mxu0 %v418
    %1605 = vmatprep.subr.mxu0 0.0
    %1606 = vmatpush1.msra.mxu0 %v415
    %1607 = vmatprep.subr.mxu0 0.0
    %1608 = vmatpush1.msra.mxu0 %v412
    %1609 = vmatprep.subr.mxu0 0.0
    %1610 = vmatpush1.msra.mxu0 %v409
    %1611 = vmatprep.subr.mxu0 0.0
    %1612 = vmatpush1.msra.mxu0 %v406
    %1613 = vmatprep.subr.mxu0 0.0
    %1614 = vmatpush1.msra.mxu0 %v403
    %1615 = vmatprep.subr.mxu0 0.0
    %1616 = vmatpush1.msra.mxu0 %v400
    %1617 = vmatprep.subr.mxu0 0.0
    %1618 = vmatpush1.msra.mxu0 %v397
    %1619 = vmatprep.subr.mxu0 0.0
    %1620 = vmatpush1.msra.mxu0 %v394
    %1621 = vmatprep.subr.mxu0 0.0
    %1622 = vmatpush1.msra.mxu0 %v391
    %1623 = vmatprep.subr.mxu0 0.0
    %1624 = vmatpush1.msra.mxu0 %v388
    %1625 = vmatprep.subr.mxu0 0.0
    %1626 = vmatpush1.msra.mxu0 %v385
    %1627 = vmatprep.subr.mxu0 0.0
    %1628 = vmatpush1.msra.mxu0 %v382
    %1629 = vmatprep.subr.mxu0 0.0
    %1630 = vmatpush1.msra.mxu0 %v379
    %1631 = vmatprep.subr.mxu0 0.0
    %1632 = vmatpush1.msra.mxu0 %v376
    %1633 = vmatprep.subr.mxu0 0.0
    %1634 = vmatpush1.msra.mxu0 %v373
    %1635 = vmatprep.subr.mxu0 0.0
    %1636 = vmatpush2.msra.mxu0 0.0
    %1637 = vmatprep.subr.mxu0 0.0
    %1638 = vmatpush2.msra.mxu0 0.0
    %1639 = vmatprep.subr.mxu0 0.0
    %1640 = vmatpush2.msra.mxu0 0.0
    %1641 = vmatprep.subr.mxu0 0.0
    %1642 = vmatpush2.msra.mxu0 0.0
    %1643 = vmatprep.subr.mxu0 0.0
    %1644 = vmatpush2.msra.mxu0 0.0
    %1645 = vmatprep.subr.mxu0 0.0
    %1646 = vmatpush2.msra.mxu0 0.0
    %1647 = vmatprep.subr.mxu0 0.0
    %1648 = vmatpush2.msra.mxu0 0.0
    %1649 = vmatprep.subr.mxu0 0.0
    %1650 = vmatpush2.msra.mxu0 0.0
    %1651 = vmatprep.subr.mxu0 0.0
    %1652 = vmatpush2.msra.mxu0 0.0
    %1653 = vmatprep.subr.mxu0 0.0
    %1654 = vmatpush2.msra.mxu0 0.0
    %1655 = vmatprep.subr.mxu0 0.0
    %1656 = vmatpush2.msra.mxu0 0.0
    %1657 = vmatprep.subr.mxu0 0.0
    %1658 = vmatpush2.msra.mxu0 0.0
    %1659 = vmatprep.subr.mxu0 0.0
    %1660 = vmatpush2.msra.mxu0 0.0
    %1661 = vmatprep.subr.mxu0 0.0
    %1662 = vmatpush2.msra.mxu0 0.0
    %1663 = vmatprep.subr.mxu0 0.0
    %1664 = vmatpush2.msra.mxu0 0.0
    %1665 = vmatprep.subr.mxu0 0.0
    %1666 = vmatpush2.msra.mxu0 0.0
    %1667 = vmatprep.mubr.f32.mxu0 0.0
    %1668 = vmatmul.mubr.f32.gmra.mxu0 %v1531
    %v1669 = vpop.f32.mrf.mxu0
    %v1670 = vadd.f32 0.0, %v1669
    %v1671 = vpop.f32.mrf.mxu0
    %1672 = vdwg.mxu0
    %v1673 = vadd.f32 %v262, %v1599
    %v1674 = vmul.f32 %v1673, 0.5
    %v1675 = vtanh.pop %v1674
    %v1676 = vadd.f32 %v1675, 1.0
    %v1677 = vmul.f32 %v1676, 0.5
    %v1678 = vadd.f32 %v264, %v1601
    %v1679 = vmul.f32 %v1678, 0.5
    %v1680 = vtanh.pop %v1679
    %v1681 = vadd.f32 %v1680, 1.0
    %v1682 = vmul.f32 %v1681, 0.5
    %v1683 = vadd.f32 %v1670, %v43
    %v1684 = vmul.f32 %v1677, %v1683
    %v1685 = vadd.f32 %v368, %v1684
    %v1686 = vtanh.pop %v1685
    %v1687 = vsub.f32 1.0, %v1682
    %v1688 = vmul.f32 %v1687, %v1686
    %v1689 = vmul.f32 %v1682, %v1531
    %v1690 = vadd.f32 %v1688, %v1689
    %v1691 = vld [vmem:[#allocation2 + $0x180] sm:$0xff]
    %v1692 = vld [vmem:[#allocation2 + $0x188] sm:$0xff]
    %v1693 = vld [vmem:[#allocation2 + $0x190] sm:$0xff]
    %v1694 = vld [vmem:[#allocation2 + $0x198] sm:$0xff]
    %v1695 = vld [vmem:[#allocation2 + $0x1a0] sm:$0xff]
    %v1696 = vld [vmem:[#allocation2 + $0x1a8] sm:$0xff]
    %v1697 = vld [vmem:[#allocation2 + $0x1b0] sm:$0xff]
    %v1698 = vld [vmem:[#allocation2 + $0x1b8] sm:$0xff]
    %v1699 = vld [vmem:[#allocation2 + $0x1c0] sm:$0xff]
    %v1700 = vld [vmem:[#allocation2 + $0x1c8] sm:$0xff]
    %v1701 = vld [vmem:[#allocation2 + $0x1d0] sm:$0xff]
    %v1702 = vld [vmem:[#allocation2 + $0x1d8] sm:$0xff]
    %v1703 = vld [vmem:[#allocation2 + $0x1e0] sm:$0xff]
    %v1704 = vld [vmem:[#allocation2 + $0x1e8] sm:$0xff]
    %v1705 = vld [vmem:[#allocation2 + $0x1f0] sm:$0xff]
    %v1706 = vld [vmem:[#allocation2 + $0x1f8] sm:$0xff]
    %v1707 = vld [vmem:[#allocation2 + $0x200] sm:$0xff]
    %v1708 = vld [vmem:[#allocation2 + $0x208] sm:$0xff]
    %v1709 = vld [vmem:[#allocation2 + $0x210] sm:$0xff]
    %v1710 = vld [vmem:[#allocation2 + $0x218] sm:$0xff]
    %v1711 = vld [vmem:[#allocation2 + $0x220] sm:$0xff]
    %v1712 = vld [vmem:[#allocation2 + $0x228] sm:$0xff]
    %v1713 = vld [vmem:[#allocation2 + $0x230] sm:$0xff]
    %v1714 = vld [vmem:[#allocation2 + $0x238] sm:$0xff]
    %v1715 = vld [vmem:[#allocation2 + $0x240] sm:$0xff]
    %v1716 = vld [vmem:[#allocation2 + $0x248] sm:$0xff]
    %v1717 = vld [vmem:[#allocation2 + $0x250] sm:$0xff]
    %v1718 = vld [vmem:[#allocation2 + $0x258] sm:$0xff]
    %v1719 = vld [vmem:[#allocation2 + $0x260] sm:$0xff]
    %v1720 = vld [vmem:[#allocation2 + $0x268] sm:$0xff]
    %v1721 = vld [vmem:[#allocation2 + $0x270] sm:$0xff]
    %v1722 = vld [vmem:[#allocation2 + $0x278] sm:$0xff]
    %v1723 = vld [vmem:[#allocation2 + $0x280] sm:$0xff]
    %v1724 = vld [vmem:[#allocation2 + $0x288] sm:$0xff]
    %v1725 = vld [vmem:[#allocation2 + $0x290] sm:$0xff]
    %v1726 = vld [vmem:[#allocation2 + $0x298] sm:$0xff]
    %v1727 = vld [vmem:[#allocation2 + $0x2a0] sm:$0xff]
    %v1728 = vld [vmem:[#allocation2 + $0x2a8] sm:$0xff]
    %v1729 = vld [vmem:[#allocation2 + $0x2b0] sm:$0xff]
    %v1730 = vld [vmem:[#allocation2 + $0x2b8] sm:$0xff]
    %v1731 = vld [vmem:[#allocation2 + $0x2c0] sm:$0xff]
    %v1732 = vld [vmem:[#allocation2 + $0x2c8] sm:$0xff]
    %v1733 = vld [vmem:[#allocation2 + $0x2d0] sm:$0xff]
    %v1734 = vld [vmem:[#allocation2 + $0x2d8] sm:$0xff]
    %v1735 = vld [vmem:[#allocation2 + $0x2e0] sm:$0xff]
    %v1736 = vld [vmem:[#allocation2 + $0x2e8] sm:$0xff]
    %v1737 = vld [vmem:[#allocation2 + $0x2f0] sm:$0xff]
    %v1738 = vld [vmem:[#allocation2 + $0x2f8] sm:$0xff]
    %1739 = vmatprep.subr.mxu0 %v1737
    %1740 = vmatpush1.msra.mxu0 %v1736
    %1741 = vmatprep.subr.mxu0 %v1734
    %1742 = vmatpush1.msra.mxu0 %v1733
    %1743 = vmatprep.subr.mxu0 %v1731
    %1744 = vmatpush1.msra.mxu0 %v1730
    %1745 = vmatprep.subr.mxu0 %v1728
    %1746 = vmatpush1.msra.mxu0 %v1727
    %1747 = vmatprep.subr.mxu0 %v1725
    %1748 = vmatpush1.msra.mxu0 %v1724
    %1749 = vmatprep.subr.mxu0 %v1722
    %1750 = vmatpush1.msra.mxu0 %v1721
    %1751 = vmatprep.subr.mxu0 %v1719
    %1752 = vmatpush1.msra.mxu0 %v1718
    %1753 = vmatprep.subr.mxu0 %v1716
    %1754 = vmatpush1.msra.mxu0 %v1715
    %1755 = vmatprep.subr.mxu0 %v1713
    %1756 = vmatpush1.msra.mxu0 %v1712
    %1757 = vmatprep.subr.mxu0 %v1710
    %1758 = vmatpush1.msra.mxu0 %v1709
    %1759 = vmatprep.subr.mxu0 %v1707
    %1760 = vmatpush1.msra.mxu0 %v1706
    %1761 = vmatprep.subr.mxu0 %v1704
    %1762 = vmatpush1.msra.mxu0 %v1703
    %1763 = vmatprep.subr.mxu0 %v1701
    %1764 = vmatpush1.msra.mxu0 %v1700
    %1765 = vmatprep.subr.mxu0 %v1698
    %1766 = vmatpush1.msra.mxu0 %v1697
    %1767 = vmatprep.subr.mxu0 %v1695
    %1768 = vmatpush1.msra.mxu0 %v1694
    %1769 = vmatprep.subr.mxu0 %v1692
    %1770 = vmatpush1.msra.mxu0 %v1691
    %1771 = vmatprep.subr.mxu0 0.0
    %1772 = vmatpush2.msra.mxu0 0.0
    %1773 = vmatprep.subr.mxu0 0.0
    %1774 = vmatpush2.msra.mxu0 0.0
    %1775 = vmatprep.subr.mxu0 0.0
    %1776 = vmatpush2.msra.mxu0 0.0
    %1777 = vmatprep.subr.mxu0 0.0
    %1778 = vmatpush2.msra.mxu0 0.0
    %1779 = vmatprep.subr.mxu0 0.0
    %1780 = vmatpush2.msra.mxu0 0.0
    %1781 = vmatprep.subr.mxu0 0.0
    %1782 = vmatpush2.msra.mxu0 0.0
    %1783 = vmatprep.subr.mxu0 0.0
    %1784 = vmatpush2.msra.mxu0 0.0
    %1785 = vmatprep.subr.mxu0 0.0
    %1786 = vmatpush2.msra.mxu0 0.0
    %1787 = vmatprep.subr.mxu0 0.0
    %1788 = vmatpush2.msra.mxu0 0.0
    %1789 = vmatprep.subr.mxu0 0.0
    %1790 = vmatpush2.msra.mxu0 0.0
    %1791 = vmatprep.subr.mxu0 0.0
    %1792 = vmatpush2.msra.mxu0 0.0
    %1793 = vmatprep.subr.mxu0 0.0
    %1794 = vmatpush2.msra.mxu0 0.0
    %1795 = vmatprep.subr.mxu0 0.0
    %1796 = vmatpush2.msra.mxu0 0.0
    %1797 = vmatprep.subr.mxu0 0.0
    %1798 = vmatpush2.msra.mxu0 0.0
    %1799 = vmatprep.subr.mxu0 0.0
    %1800 = vmatpush2.msra.mxu0 0.0
    %1801 = vmatprep.subr.mxu0 0.0
    %1802 = vmatpush2.msra.mxu0 0.0
    %1803 = vmatprep.mubr.f32.mxu0 0.0
    %1804 = vmatmul.mubr.f32.gmra.mxu0 %v104
    %v1805 = vpop.f32.mrf.mxu0
    %v1806 = vadd.f32 0.0, %v1805
    %v1807 = vpop.f32.mrf.mxu0
    %v1808 = vadd.f32 0.0, %v1807
    %1809 = vdwg.mxu0
    %1810 = vmatprep.subr.mxu0 0.0
    %1811 = vmatpush1.msra.mxu0 %v1738
    %1812 = vmatprep.subr.mxu0 0.0
    %1813 = vmatpush1.msra.mxu0 %v1735
    %1814 = vmatprep.subr.mxu0 0.0
    %1815 = vmatpush1.msra.mxu0 %v1732
    %1816 = vmatprep.subr.mxu0 0.0
    %1817 = vmatpush1.msra.mxu0 %v1729
    %1818 = vmatprep.subr.mxu0 0.0
    %1819 = vmatpush1.msra.mxu0 %v1726
    %1820 = vmatprep.subr.mxu0 0.0
    %1821 = vmatpush1.msra.mxu0 %v1723
    %1822 = vmatprep.subr.mxu0 0.0
    %1823 = vmatpush1.msra.mxu0 %v1720
    %1824 = vmatprep.subr.mxu0 0.0
    %1825 = vmatpush1.msra.mxu0 %v1717
    %1826 = vmatprep.subr.mxu0 0.0
    %1827 = vmatpush1.msra.mxu0 %v1714
    %1828 = vmatprep.subr.mxu0 0.0
    %1829 = vmatpush1.msra.mxu0 %v1711
    %1830 = vmatprep.subr.mxu0 0.0
    %1831 = vmatpush1.msra.mxu0 %v1708
    %1832 = vmatprep.subr.mxu0 0.0
    %1833 = vmatpush1.msra.mxu0 %v1705
    %1834 = vmatprep.subr.mxu0 0.0
    %1835 = vmatpush1.msra.mxu0 %v1702
    %1836 = vmatprep.subr.mxu0 0.0
    %1837 = vmatpush1.msra.mxu0 %v1699
    %1838 = vmatprep.subr.mxu0 0.0
    %1839 = vmatpush1.msra.mxu0 %v1696
    %1840 = vmatprep.subr.mxu0 0.0
    %1841 = vmatpush1.msra.mxu0 %v1693
    %1842 = vmatprep.subr.mxu0 0.0
    %1843 = vmatpush2.msra.mxu0 0.0
    %1844 = vmatprep.subr.mxu0 0.0
    %1845 = vmatpush2.msra.mxu0 0.0
    %1846 = vmatprep.subr.mxu0 0.0
    %1847 = vmatpush2.msra.mxu0 0.0
    %1848 = vmatprep.subr.mxu0 0.0
    %1849 = vmatpush2.msra.mxu0 0.0
    %1850 = vmatprep.subr.mxu0 0.0
    %1851 = vmatpush2.msra.mxu0 0.0
    %1852 = vmatprep.subr.mxu0 0.0
    %1853 = vmatpush2.msra.mxu0 0.0
    %1854 = vmatprep.subr.mxu0 0.0
    %1855 = vmatpush2.msra.mxu0 0.0
    %1856 = vmatprep.subr.mxu0 0.0
    %1857 = vmatpush2.msra.mxu0 0.0
    %1858 = vmatprep.subr.mxu0 0.0
    %1859 = vmatpush2.msra.mxu0 0.0
    %1860 = vmatprep.subr.mxu0 0.0
    %1861 = vmatpush2.msra.mxu0 0.0
    %1862 = vmatprep.subr.mxu0 0.0
    %1863 = vmatpush2.msra.mxu0 0.0
    %1864 = vmatprep.subr.mxu0 0.0
    %1865 = vmatpush2.msra.mxu0 0.0
    %1866 = vmatprep.subr.mxu0 0.0
    %1867 = vmatpush2.msra.mxu0 0.0
    %1868 = vmatprep.subr.mxu0 0.0
    %1869 = vmatpush2.msra.mxu0 0.0
    %1870 = vmatprep.subr.mxu0 0.0
    %1871 = vmatpush2.msra.mxu0 0.0
    %1872 = vmatprep.subr.mxu0 0.0
    %1873 = vmatpush2.msra.mxu0 0.0
    %1874 = vmatprep.mubr.f32.mxu0 0.0
    %1875 = vmatmul.mubr.f32.gmra.mxu0 %v104
    %v1876 = vpop.f32.mrf.mxu0
    %v1877 = vadd.f32 0.0, %v1876
    %v1878 = vpop.f32.mrf.mxu0
    %1879 = vdwg.mxu0
    %v1880 = vmul.f32 %v1806, 0.5
    %v1881 = vtanh.pop %v1880
    %v1882 = vadd.f32 %v1881, 1.0
    %v1883 = vmul.f32 %v1882, 0.5
    %v1884 = vmul.f32 %v1808, 0.5
    %v1885 = vtanh.pop %v1884
    %v1886 = vadd.f32 %v1885, 1.0
    %v1887 = vmul.f32 %v1886, 0.5
    %v1888 = vmul.f32 %v1883, %v44
    %v1889 = vadd.f32 %v1877, %v1888
    %v1890 = vtanh.pop %v1889
    %v1891 = vsub.f32 1.0, %v1887
    %v1892 = vmul.f32 %v1891, %v1890
    %v1893 = vld [vmem:[#allocation5] sm:$0xff]
    %v1894 = vld [vmem:[#allocation5 + $0x8] sm:$0xff]
    %v1895 = vld [vmem:[#allocation5 + $0x10] sm:$0xff]
    %v1896 = vld [vmem:[#allocation5 + $0x18] sm:$0xff]
    %v1897 = vld [vmem:[#allocation5 + $0x20] sm:$0xff]
    %v1898 = vld [vmem:[#allocation5 + $0x28] sm:$0xff]
    %v1899 = vld [vmem:[#allocation5 + $0x30] sm:$0xff]
    %v1900 = vld [vmem:[#allocation5 + $0x38] sm:$0xff]
    %v1901 = vld [vmem:[#allocation5 + $0x40] sm:$0xff]
    %v1902 = vld [vmem:[#allocation5 + $0x48] sm:$0xff]
    %v1903 = vld [vmem:[#allocation5 + $0x50] sm:$0xff]
    %v1904 = vld [vmem:[#allocation5 + $0x58] sm:$0xff]
    %v1905 = vld [vmem:[#allocation5 + $0x60] sm:$0xff]
    %v1906 = vld [vmem:[#allocation5 + $0x68] sm:$0xff]
    %v1907 = vld [vmem:[#allocation5 + $0x70] sm:$0xff]
    %v1908 = vld [vmem:[#allocation5 + $0x78] sm:$0xff]
    %v1909 = vld [vmem:[#allocation5 + $0x80] sm:$0xff]
    %v1910 = vld [vmem:[#allocation5 + $0x88] sm:$0xff]
    %v1911 = vld [vmem:[#allocation5 + $0x90] sm:$0xff]
    %v1912 = vld [vmem:[#allocation5 + $0x98] sm:$0xff]
    %v1913 = vld [vmem:[#allocation5 + $0xa0] sm:$0xff]
    %v1914 = vld [vmem:[#allocation5 + $0xa8] sm:$0xff]
    %v1915 = vld [vmem:[#allocation5 + $0xb0] sm:$0xff]
    %v1916 = vld [vmem:[#allocation5 + $0xb8] sm:$0xff]
    %v1917 = vld [vmem:[#allocation5 + $0xc0] sm:$0xff]
    %v1918 = vld [vmem:[#allocation5 + $0xc8] sm:$0xff]
    %v1919 = vld [vmem:[#allocation5 + $0xd0] sm:$0xff]
    %v1920 = vld [vmem:[#allocation5 + $0xd8] sm:$0xff]
    %v1921 = vld [vmem:[#allocation5 + $0xe0] sm:$0xff]
    %v1922 = vld [vmem:[#allocation5 + $0xe8] sm:$0xff]
    %v1923 = vld [vmem:[#allocation5 + $0xf0] sm:$0xff]
    %v1924 = vld [vmem:[#allocation5 + $0xf8] sm:$0xff]
    %1925 = vmatprep.subr.mxu0 0.0
    %1926 = vmatpush1.msra.mxu0 %v1924
    %1927 = vmatprep.subr.mxu0 0.0
    %1928 = vmatpush1.msra.mxu0 %v1923
    %1929 = vmatprep.subr.mxu0 0.0
    %1930 = vmatpush1.msra.mxu0 %v1922
    %1931 = vmatprep.subr.mxu0 0.0
    %1932 = vmatpush1.msra.mxu0 %v1921
    %1933 = vmatprep.subr.mxu0 0.0
    %1934 = vmatpush1.msra.mxu0 %v1920
    %1935 = vmatprep.subr.mxu0 0.0
    %1936 = vmatpush1.msra.mxu0 %v1919
    %1937 = vmatprep.subr.mxu0 0.0
    %1938 = vmatpush1.msra.mxu0 %v1918
    %1939 = vmatprep.subr.mxu0 0.0
    %1940 = vmatpush1.msra.mxu0 %v1917
    %1941 = vmatprep.subr.mxu0 0.0
    %1942 = vmatpush1.msra.mxu0 %v1916
    %1943 = vmatprep.subr.mxu0 0.0
    %1944 = vmatpush1.msra.mxu0 %v1915
    %1945 = vmatprep.subr.mxu0 0.0
    %1946 = vmatpush1.msra.mxu0 %v1914
    %1947 = vmatprep.subr.mxu0 0.0
    %1948 = vmatpush1.msra.mxu0 %v1913
    %1949 = vmatprep.subr.mxu0 0.0
    %1950 = vmatpush1.msra.mxu0 %v1912
    %1951 = vmatprep.subr.mxu0 0.0
    %1952 = vmatpush1.msra.mxu0 %v1911
    %1953 = vmatprep.subr.mxu0 0.0
    %1954 = vmatpush1.msra.mxu0 %v1910
    %1955 = vmatprep.subr.mxu0 0.0
    %1956 = vmatpush1.msra.mxu0 %v1909
    %1957 = vmatprep.subr.mxu0 0.0
    %1958 = vmatpush2.msra.mxu0 0.0
    %1959 = vmatprep.subr.mxu0 0.0
    %1960 = vmatpush2.msra.mxu0 0.0
    %1961 = vmatprep.subr.mxu0 0.0
    %1962 = vmatpush2.msra.mxu0 0.0
    %1963 = vmatprep.subr.mxu0 0.0
    %1964 = vmatpush2.msra.mxu0 0.0
    %1965 = vmatprep.subr.mxu0 0.0
    %1966 = vmatpush2.msra.mxu0 0.0
    %1967 = vmatprep.subr.mxu0 0.0
    %1968 = vmatpush2.msra.mxu0 0.0
    %1969 = vmatprep.subr.mxu0 0.0
    %1970 = vmatpush2.msra.mxu0 0.0
    %1971 = vmatprep.subr.mxu0 0.0
    %1972 = vmatpush2.msra.mxu0 0.0
    %1973 = vmatprep.subr.mxu0 0.0
    %1974 = vmatpush2.msra.mxu0 0.0
    %1975 = vmatprep.subr.mxu0 0.0
    %1976 = vmatpush2.msra.mxu0 0.0
    %1977 = vmatprep.subr.mxu0 0.0
    %1978 = vmatpush2.msra.mxu0 0.0
    %1979 = vmatprep.subr.mxu0 0.0
    %1980 = vmatpush2.msra.mxu0 0.0
    %1981 = vmatprep.subr.mxu0 0.0
    %1982 = vmatpush2.msra.mxu0 0.0
    %1983 = vmatprep.subr.mxu0 0.0
    %1984 = vmatpush2.msra.mxu0 0.0
    %1985 = vmatprep.subr.mxu0 0.0
    %1986 = vmatpush2.msra.mxu0 0.0
    %1987 = vmatprep.subr.mxu0 0.0
    %1988 = vmatpush2.msra.mxu0 0.0
    %1989 = vmatprep.mubr.f32.mxu0 0.0
    %1990 = vmatmul.mubr.f32.gmra.mxu0 %v1892
    %v1991 = vpop.f32.mrf.mxu0
    %v1992 = vadd.f32 0.0, %v1991
    %v1993 = vpop.f32.mrf.mxu0
    %1994 = vdwg.mxu0
    %1995 = vmatprep.subr.mxu0 0.0
    %1996 = vmatpush1.msra.mxu0 %v1908
    %1997 = vmatprep.subr.mxu0 0.0
    %1998 = vmatpush1.msra.mxu0 %v1907
    %1999 = vmatprep.subr.mxu0 0.0
    %2000 = vmatpush1.msra.mxu0 %v1906
    %2001 = vmatprep.subr.mxu0 0.0
    %2002 = vmatpush1.msra.mxu0 %v1905
    %2003 = vmatprep.subr.mxu0 0.0
    %2004 = vmatpush1.msra.mxu0 %v1904
    %2005 = vmatprep.subr.mxu0 0.0
    %2006 = vmatpush1.msra.mxu0 %v1903
    %2007 = vmatprep.subr.mxu0 0.0
    %2008 = vmatpush1.msra.mxu0 %v1902
    %2009 = vmatprep.subr.mxu0 0.0
    %2010 = vmatpush1.msra.mxu0 %v1901
    %2011 = vmatprep.subr.mxu0 0.0
    %2012 = vmatpush1.msra.mxu0 %v1900
    %2013 = vmatprep.subr.mxu0 0.0
    %2014 = vmatpush1.msra.mxu0 %v1899
    %2015 = vmatprep.subr.mxu0 0.0
    %2016 = vmatpush1.msra.mxu0 %v1898
    %2017 = vmatprep.subr.mxu0 0.0
    %2018 = vmatpush1.msra.mxu0 %v1897
    %2019 = vmatprep.subr.mxu0 0.0
    %2020 = vmatpush1.msra.mxu0 %v1896
    %2021 = vmatprep.subr.mxu0 0.0
    %2022 = vmatpush1.msra.mxu0 %v1895
    %2023 = vmatprep.subr.mxu0 0.0
    %2024 = vmatpush1.msra.mxu0 %v1894
    %2025 = vmatprep.subr.mxu0 0.0
    %2026 = vmatpush1.msra.mxu0 %v1893
    %2027 = vmatprep.subr.mxu0 0.0
    %2028 = vmatpush2.msra.mxu0 0.0
    %2029 = vmatprep.subr.mxu0 0.0
    %2030 = vmatpush2.msra.mxu0 0.0
    %2031 = vmatprep.subr.mxu0 0.0
    %2032 = vmatpush2.msra.mxu0 0.0
    %2033 = vmatprep.subr.mxu0 0.0
    %2034 = vmatpush2.msra.mxu0 0.0
    %2035 = vmatprep.subr.mxu0 0.0
    %2036 = vmatpush2.msra.mxu0 0.0
    %2037 = vmatprep.subr.mxu0 0.0
    %2038 = vmatpush2.msra.mxu0 0.0
    %2039 = vmatprep.subr.mxu0 0.0
    %2040 = vmatpush2.msra.mxu0 0.0
    %2041 = vmatprep.subr.mxu0 0.0
    %2042 = vmatpush2.msra.mxu0 0.0
    %2043 = vmatprep.subr.mxu0 0.0
    %2044 = vmatpush2.msra.mxu0 0.0
    %2045 = vmatprep.subr.mxu0 0.0
    %2046 = vmatpush2.msra.mxu0 0.0
    %2047 = vmatprep.subr.mxu0 0.0
    %2048 = vmatpush2.msra.mxu0 0.0
    %2049 = vmatprep.subr.mxu0 0.0
    %2050 = vmatpush2.msra.mxu0 0.0
    %2051 = vmatprep.subr.mxu0 0.0
    %2052 = vmatpush2.msra.mxu0 0.0
    %2053 = vmatprep.subr.mxu0 0.0
    %2054 = vmatpush2.msra.mxu0 0.0
    %2055 = vmatprep.subr.mxu0 0.0
    %2056 = vmatpush2.msra.mxu0 0.0
    %2057 = vmatprep.subr.mxu0 0.0
    %2058 = vmatpush2.msra.mxu0 0.0
    %2059 = vmatprep.mubr.f32.mxu0 0.0
    %2060 = vmatmul.mubr.f32.gmra.mxu0 %v1690
    %v2061 = vpop.f32.mrf.mxu0
    %v2062 = vadd.f32 %v1992, %v2061
    %v2063 = vpop.f32.mrf.mxu0
    %2064 = vdwg.mxu0
    %v2065 = vadd.f32 %v2062, %v45
    %v2066 = vmax.f32 %v2065, 0.0
    %v2067 = vld [vmem:[#allocation5 + $0x100] sm:$0xff]
    %v2068 = vld [vmem:[#allocation5 + $0x108] sm:$0xff]
    %v2069 = vld [vmem:[#allocation5 + $0x110] sm:$0xff]
    %v2070 = vld [vmem:[#allocation5 + $0x118] sm:$0xff]
    %v2071 = vld [vmem:[#allocation5 + $0x120] sm:$0xff]
    %v2072 = vld [vmem:[#allocation5 + $0x128] sm:$0xff]
    %v2073 = vld [vmem:[#allocation5 + $0x130] sm:$0xff]
    %v2074 = vld [vmem:[#allocation5 + $0x138] sm:$0xff]
    %v2075 = vld [vmem:[#allocation5 + $0x140] sm:$0xff]
    %v2076 = vld [vmem:[#allocation5 + $0x148] sm:$0xff]
    %v2077 = vld [vmem:[#allocation5 + $0x150] sm:$0xff]
    %v2078 = vld [vmem:[#allocation5 + $0x158] sm:$0xff]
    %v2079 = vld [vmem:[#allocation5 + $0x160] sm:$0xff]
    %v2080 = vld [vmem:[#allocation5 + $0x168] sm:$0xff]
    %v2081 = vld [vmem:[#allocation5 + $0x170] sm:$0xff]
    %v2082 = vld [vmem:[#allocation5 + $0x178] sm:$0xff]
    %2083 = vmatprep.subr.mxu0 0.0
    %2084 = vmatpush1.msra.mxu0 %v2082
    %2085 = vmatprep.subr.mxu0 0.0
    %2086 = vmatpush1.msra.mxu0 %v2081
    %2087 = vmatprep.subr.mxu0 0.0
    %2088 = vmatpush1.msra.mxu0 %v2080
    %2089 = vmatprep.subr.mxu0 0.0
    %2090 = vmatpush1.msra.mxu0 %v2079
    %2091 = vmatprep.subr.mxu0 0.0
    %2092 = vmatpush1.msra.mxu0 %v2078
    %2093 = vmatprep.subr.mxu0 0.0
    %2094 = vmatpush1.msra.mxu0 %v2077
    %2095 = vmatprep.subr.mxu0 0.0
    %2096 = vmatpush1.msra.mxu0 %v2076
    %2097 = vmatprep.subr.mxu0 0.0
    %2098 = vmatpush1.msra.mxu0 %v2075
    %2099 = vmatprep.subr.mxu0 0.0
    %2100 = vmatpush1.msra.mxu0 %v2074
    %2101 = vmatprep.subr.mxu0 0.0
    %2102 = vmatpush1.msra.mxu0 %v2073
    %2103 = vmatprep.subr.mxu0 0.0
    %2104 = vmatpush1.msra.mxu0 %v2072
    %2105 = vmatprep.subr.mxu0 0.0
    %2106 = vmatpush1.msra.mxu0 %v2071
    %2107 = vmatprep.subr.mxu0 0.0
    %2108 = vmatpush1.msra.mxu0 %v2070
    %2109 = vmatprep.subr.mxu0 0.0
    %2110 = vmatpush1.msra.mxu0 %v2069
    %2111 = vmatprep.subr.mxu0 0.0
    %2112 = vmatpush1.msra.mxu0 %v2068
    %2113 = vmatprep.subr.mxu0 0.0
    %2114 = vmatpush1.msra.mxu0 %v2067
    %2115 = vmatprep.subr.mxu0 0.0
    %2116 = vmatpush2.msra.mxu0 0.0
    %2117 = vmatprep.subr.mxu0 0.0
    %2118 = vmatpush2.msra.mxu0 0.0
    %2119 = vmatprep.subr.mxu0 0.0
    %2120 = vmatpush2.msra.mxu0 0.0
    %2121 = vmatprep.subr.mxu0 0.0
    %2122 = vmatpush2.msra.mxu0 0.0
    %2123 = vmatprep.subr.mxu0 0.0
    %2124 = vmatpush2.msra.mxu0 0.0
    %2125 = vmatprep.subr.mxu0 0.0
    %2126 = vmatpush2.msra.mxu0 0.0
    %2127 = vmatprep.subr.mxu0 0.0
    %2128 = vmatpush2.msra.mxu0 0.0
    %2129 = vmatprep.subr.mxu0 0.0
    %2130 = vmatpush2.msra.mxu0 0.0
    %2131 = vmatprep.subr.mxu0 0.0
    %2132 = vmatpush2.msra.mxu0 0.0
    %2133 = vmatprep.subr.mxu0 0.0
    %2134 = vmatpush2.msra.mxu0 0.0
    %2135 = vmatprep.subr.mxu0 0.0
    %2136 = vmatpush2.msra.mxu0 0.0
    %2137 = vmatprep.subr.mxu0 0.0
    %2138 = vmatpush2.msra.mxu0 0.0
    %2139 = vmatprep.subr.mxu0 0.0
    %2140 = vmatpush2.msra.mxu0 0.0
    %2141 = vmatprep.subr.mxu0 0.0
    %2142 = vmatpush2.msra.mxu0 0.0
    %2143 = vmatprep.subr.mxu0 0.0
    %2144 = vmatpush2.msra.mxu0 0.0
    %2145 = vmatprep.subr.mxu0 0.0
    %2146 = vmatpush2.msra.mxu0 0.0
    %2147 = vmatprep.mubr.f32.mxu0 0.0
    %2148 = vmatmul.mubr.f32.gmra.mxu0 %v2066
    %v2149 = vpop.f32.mrf.mxu0
    %v2150 = vadd.f32 %v46, %v2149
    %v2151 = vpop.f32.mrf.mxu0
    %2152 = vdwg.mxu0
    %vm2153 = vcmask 25600
    %2154 = vst.msk [vmem:[#allocation7] sm:$0x3] %vm2153, %v2150
    // Predicated region
    $region22: #{bigru_classifier.1} parent=1 // pred_check
      _
    $region23: #{bigru_classifier.1} parent=1 // pred_check_branch
      %2156 = sbr.rel (0) target = $region25
    $region24: #{bigru_classifier.1} parent=1 // pred_region
      %s2158 = ssub.s32 32, 32
      %2159 = vsyncadd [#allocation4], %s2158
      %s2161 = sshll.u32 [#allocation7], 4
      %s2162 = int_to_ptr.vmem [resolvable:$true] %s2161
      %2164 = dma.vmem_to_hbm [thread:$0]  %s2162, 32, %s3, [#allocation4]
    $region25: #{bigru_classifier.1} parent=1 // pred_fallthru
      _
    // Predicated region
    $region26: #{bigru_classifier.1} parent=1 // pred_check
      _
    $region27: #{bigru_classifier.1} parent=1 // pred_check_branch
      %2166 = sbr.rel (0) target = $region29
    $region28: #{bigru_classifier.1} parent=1 // pred_region
      %2167 = dma.done [#allocation4], 32
    $region29: #{bigru_classifier.1} parent=1 // pred_fallthru
      _
    %2168 = vsyncpa [#allocation3], 1
    %2169 = vsyncpa [#allocation6], 1
    %2170 = vsyncpa [#allocation4], 1

</llo_original>
